<compile_context>
chip_gen: v6e
topology: v6e:2x2x1
jax: 0.10.0
libtpu: 0.0.40
codegen_flags: <defaults>
</compile_context>

<pallas_src>
import jax
import jax.numpy as jnp
from jax.experimental import pallas as pl
from jax.experimental.pallas import tpu as pltpu


# ----------------------------- fused Pallas kernel --------------------------

def make_fused_forward_kernel(num_layers, gin_hid):
    """One grid step processes GB graphs end to end:
       GIN layers (batched block-diag A @ h, shared-weight MLPs) -> segment-sum pool
       -> accumulate into proj_head first layer -> ReLU -> proj_head second layer.
    """

    def kernel(a_ref, x_ref, w1_0_ref, w_hh_ref, gbias_ref,
               pw1_ref, pw2_ref, pbias_ref, o_ref):
        a = a_ref[...]            # [GB, n, n]   per-graph (A + I) blocks
        h = x_ref[...]            # [GB, n, F]   node features
        w_hh = w_hh_ref[...]      # [2L-1, hid, hid]  (W2_0, W1_1, W2_1, W1_2, ...)
        gbias = gbias_ref[...]    # [L, 2, hid]       (b1, b2 per layer)
        pw1 = pw1_ref[...]        # [L*hid, proj_hid]
        pbias = pbias_ref[...]    # [2, proj_hid]

        gpb, n, _ = a.shape
        proj_hid = pw1.shape[1]

        # proj_head first-layer pre-activation, accumulated layer by layer:
        #   z1 = concat_l(pool(h_l)) @ PW1  ==  sum_l (pool(h_l)) @ PW1[l*hid:(l+1)*hid, :]
        z1 = jnp.zeros((gpb, proj_hid), jnp.float32)

        for l in range(num_layers):
            # (A + I) @ h, per graph (block-diagonal adjacency -> batched small matmul)
            agg = jnp.einsum('gij,gjf->gif', a, h,
                             preferred_element_type=jnp.float32)        # [GB, n, d_in]
            agg = agg.reshape(gpb * n, agg.shape[-1])                   # [GB*n, d_in]

            w1 = w1_0_ref[...] if l == 0 else w_hh[2 * l - 1]           # [d_in, hid]
            w2 = w_hh[2 * l]                                            # [hid, hid]

            t = jnp.dot(agg, w1, preferred_element_type=jnp.float32) + gbias[l, 0:1, :]
            t = jnp.maximum(t, 0.0)
            h2 = jnp.dot(t, w2, preferred_element_type=jnp.float32) + gbias[l, 1:2, :]
            h2 = jnp.maximum(h2, 0.0)                                   # [GB*n, hid]
            h = h2.reshape(gpb, n, gin_hid)

            # per-graph sum pooling via segment sum (VPU/XLU, no MXU pass, no pool_mat)
            pooled = h.sum(axis=1)                                      # [GB, hid]
            z1 = z1 + jnp.dot(pooled, pw1[l * gin_hid:(l + 1) * gin_hid, :],
                              preferred_element_type=jnp.float32)

        # proj_head: ReLU(z1 + b1) @ PW2 + b2
        z1 = jnp.maximum(z1 + pbias[0:1, :], 0.0)
        o_ref[...] = (jnp.dot(z1, pw2_ref[...], preferred_element_type=jnp.float32)
                      + pbias[1:2, :])

    return kernel


# ----------------------------- wrapper --------------------------------------

def model_forward(x_blocks, a_blocks, gin_params, proj_params, *, graphs_per_block=None):
    """Equivalent of Model.forward: GIN layers -> cat(pooled reps [1:]) -> proj_head,
    fused into one pallas_call with a 1-D "parallel" grid over graph chunks."""
    num_layers = len(gin_params)
    gin_hid = gin_params[0][2].shape[1]          # GIN MLP second-linear output width
    g, n, f = x_blocks.shape
    pw1, pb1, pw2, pb2 = proj_params
    proj_hid = pw1.shape[1]
    out_dim = pw2.shape[1]

    gb = graphs_per_block or g
    assert g % gb == 0, "graphs_per_block must divide the number of graphs"

    # ---- stack per-layer GIN params into a few operands (fewer DMA descriptors) ----
    w1_0 = gin_params[0][0]                                   # [F, hid]   (layer 0 W1)
    hh = [gin_params[0][2]]                                   # W2_0
    for l in range(1, num_layers):
        hh.append(gin_params[l][0])                           # W1_l
        hh.append(gin_params[l][2])                           # W2_l
    w_hh = jnp.stack(hh, axis=0)                              # [2L-1, hid, hid]
    gbias = jnp.stack(
        [jnp.stack([p[1].reshape(-1), p[3].reshape(-1)], axis=0) for p in gin_params],
        axis=0)                                               # [L, 2, hid]
    pbias = jnp.stack([pb1.reshape(-1), pb2.reshape(-1)], axis=0)   # [2, proj_hid]

    # ---- advisory cost estimate so XLA can overlap this µs-scale call ----
    flops = 0
    d_in = f
    for _ in range(num_layers):
        flops += 2 * g * n * n * d_in                 # (A+I) @ h
        flops += 2 * g * n * d_in * gin_hid           # @ W1
        flops += 2 * g * n * gin_hid * gin_hid        # @ W2
        flops += 2 * g * gin_hid * proj_hid           # pooled @ PW1 slice
        d_in = gin_hid
    flops += 2 * g * proj_hid * out_dim               # proj_head second linear
    operands = (a_blocks, x_blocks, w1_0, w_hh, gbias, pw1, pw2, pbias)
    bytes_accessed = sum(int(v.size) * 4 for v in operands) + g * out_dim * 4

    kernel = make_fused_forward_kernel(num_layers, gin_hid)

    def const_map(ndim):
        return lambda i: (0,) * ndim

    return pl.pallas_call(
        kernel,
        out_shape=jax.ShapeDtypeStruct((g, out_dim), jnp.float32),
        grid=(g // gb,),
        in_specs=[
            pl.BlockSpec((gb, n, n), lambda i: (i, 0, 0)),     # A blocks   (pipelined)
            pl.BlockSpec((gb, n, f), lambda i: (i, 0, 0)),     # x blocks   (pipelined)
            pl.BlockSpec(w1_0.shape, const_map(2)),            # weights: constant index
            pl.BlockSpec(w_hh.shape, const_map(3)),            #   -> stay resident
            pl.BlockSpec(gbias.shape, const_map(3)),
            pl.BlockSpec(pw1.shape, const_map(2)),
            pl.BlockSpec(pw2.shape, const_map(2)),
            pl.BlockSpec(pbias.shape, const_map(2)),
        ],
        out_specs=pl.BlockSpec((gb, out_dim), lambda i: (i, 0)),
        compiler_params=pltpu.CompilerParams(
            dimension_semantics=("parallel",)),                # megacore on v7x
        cost_estimate=pl.CostEstimate(flops=flops, transcendentals=0,
                                      bytes_accessed=bytes_accessed),
    )(*operands)


# ----------------------------- setup / main ----------------------------------

def make_linear(key, d_in, d_out, scale=0.1):
    kw, kb = jax.random.split(key)
    w = scale * jax.random.normal(kw, (d_in, d_out), dtype=jnp.float32)
    b = scale * jax.random.normal(kb, (1, d_out), dtype=jnp.float32)
    return w, b


if __name__ == "__main__":
    # small, forward-consistent shapes (equal-sized graphs, contiguous nodes)
    num_graphs = 16
    nodes_per_graph = 8
    node_fea_size = 16
    gin_hid = 32
    gin_layer_n = 2
    graphs_per_block = 8                         # -> grid of 2 steps
    sample_input_emb_size = gin_layer_n * gin_hid

    key = jax.random.PRNGKey(0)
    keys = jax.random.split(key, 16)

    # node features, grouped per graph: [G, n, F]
    x_nodes = jax.random.normal(
        keys[0], (num_graphs, nodes_per_graph, node_fea_size), dtype=jnp.float32)

    # random symmetric per-graph adjacency blocks + self loops: [G, n, n]
    blk = jax.random.bernoulli(
        keys[1], 0.3, (num_graphs, nodes_per_graph, nodes_per_graph)).astype(jnp.float32)
    blk = jnp.maximum(blk, jnp.transpose(blk, (0, 2, 1)))
    a_blocks = blk + jnp.eye(nodes_per_graph, dtype=jnp.float32)[None, :, :]

    # GIN layer MLP params (2-layer ReLU MLPs)
    gin_params = []
    d_in = node_fea_size
    for l in range(gin_layer_n):
        w1, b1 = make_linear(keys[4 + 2 * l], d_in, gin_hid)
        w2, b2 = make_linear(keys[5 + 2 * l], gin_hid, gin_hid)
        gin_params.append((w1, b1, w2, b2))
        d_in = gin_hid

    # proj_head: Linear(sample_input_emb_size, hid) -> ReLU -> Linear(hid, hid)
    pw1, pb1 = make_linear(keys[10], sample_input_emb_size, gin_hid)
    pw2, pb2 = make_linear(keys[11], gin_hid, gin_hid)
    proj_params = (pw1, pb1, pw2, pb2)

    out = model_forward(x_nodes, a_blocks, gin_params, proj_params,
                        graphs_per_block=graphs_per_block)
    out = jax.block_until_ready(out)

    # pure-JAX reference check (unfused math, explicit concat path)
    h = x_nodes
    reps = []
    for (w1, b1, w2, b2) in gin_params:
        agg = jnp.einsum('gij,gjf->gif', a_blocks, h)
        t = jnp.maximum(agg @ w1 + b1, 0.0)
        h = jnp.maximum(t @ w2 + b2, 0.0)
        reps.append(h)
    pooled = jnp.concatenate([r.sum(axis=1) for r in reps], axis=-1)   # [G, L*hid]
    ref = jnp.maximum(pooled @ pw1 + pb1, 0.0) @ pw2 + pb2

    assert out.shape == (num_graphs, gin_hid)
    assert jnp.allclose(out, ref, atol=1e-4, rtol=1e-4)

    print("KERNEL_OK")
</pallas_src>

<mosaic_0001>
module attributes {stable_mosaic.version = 11 : i64} {
  func.func @kernel(%arg0: i32, %arg1: memref<8x8x8xf32, #tpu.memory_space<vmem>>, %arg2: memref<8x8x16xf32, #tpu.memory_space<vmem>>, %arg3: memref<16x32xf32, #tpu.memory_space<vmem>>, %arg4: memref<3x32x32xf32, #tpu.memory_space<vmem>>, %arg5: memref<2x2x32xf32, #tpu.memory_space<vmem>>, %arg6: memref<64x32xf32, #tpu.memory_space<vmem>>, %arg7: memref<32x32xf32, #tpu.memory_space<vmem>>, %arg8: memref<2x32xf32, #tpu.memory_space<vmem>>, %arg9: memref<8x32xf32, #tpu.memory_space<vmem>>) attributes {dimension_semantics = [#tpu.dimension_semantics<parallel>], iteration_bounds = array<i64: 2>, scalar_prefetch = 0 : i64, scratch_operands = 0 : i64, tpu.core_type = #tpu.core_type<tc>, window_params = [{transform_indices = @transform_0, window_bounds = array<i64: 8, 8, 8>}, {transform_indices = @transform_1, window_bounds = array<i64: 8, 8, 16>}, {pipeline_mode = #tpu.pipeline_mode<synchronous>, transform_indices = @transform_2, window_bounds = array<i64: 16, 32>}, {pipeline_mode = #tpu.pipeline_mode<synchronous>, transform_indices = @transform_3, window_bounds = array<i64: 3, 32, 32>}, {pipeline_mode = #tpu.pipeline_mode<synchronous>, transform_indices = @transform_4, window_bounds = array<i64: 2, 2, 32>}, {pipeline_mode = #tpu.pipeline_mode<synchronous>, transform_indices = @transform_5, window_bounds = array<i64: 64, 32>}, {pipeline_mode = #tpu.pipeline_mode<synchronous>, transform_indices = @transform_6, window_bounds = array<i64: 32, 32>}, {pipeline_mode = #tpu.pipeline_mode<synchronous>, transform_indices = @transform_7, window_bounds = array<i64: 2, 32>}, {transform_indices = @transform_8, window_bounds = array<i64: 8, 32>}]} {
    %c0 = arith.constant 0 : index
    %c0_0 = arith.constant 0 : index
    %c0_1 = arith.constant 0 : index
    %0 = vector.load %arg1[%c0, %c0_0, %c0_1] : memref<8x8x8xf32, #tpu.memory_space<vmem>>, vector<8x8x8xf32>
    %c0_2 = arith.constant 0 : index
    %c0_3 = arith.constant 0 : index
    %c0_4 = arith.constant 0 : index
    %1 = vector.load %arg2[%c0_2, %c0_3, %c0_4] : memref<8x8x16xf32, #tpu.memory_space<vmem>>, vector<8x8x16xf32>
    %c0_5 = arith.constant 0 : index
    %c0_6 = arith.constant 0 : index
    %c0_7 = arith.constant 0 : index
    %2 = vector.load %arg4[%c0_5, %c0_6, %c0_7] : memref<3x32x32xf32, #tpu.memory_space<vmem>>, vector<3x32x32xf32>
    %c0_8 = arith.constant 0 : index
    %c0_9 = arith.constant 0 : index
    %c0_10 = arith.constant 0 : index
    %3 = vector.load %arg5[%c0_8, %c0_9, %c0_10] : memref<2x2x32xf32, #tpu.memory_space<vmem>>, vector<2x2x32xf32>
    %c0_11 = arith.constant 0 : index
    %c0_12 = arith.constant 0 : index
    %4 = vector.load %arg6[%c0_11, %c0_12] : memref<64x32xf32, #tpu.memory_space<vmem>>, vector<64x32xf32>
    %c0_13 = arith.constant 0 : index
    %c0_14 = arith.constant 0 : index
    %5 = vector.load %arg8[%c0_13, %c0_14] : memref<2x32xf32, #tpu.memory_space<vmem>>, vector<2x32xf32>
    %cst = arith.constant 0.000000e+00 : f32
    %6 = vector.broadcast %cst : f32 to vector<8x32xf32>
    "tpu.trace_start"() <{level = 10 : i32, message = "gij,gjf->gif"}> : () -> ()
    %cst_15 = arith.constant dense<0.000000e+00> : vector<8x8x16xf32>
    %7 = tpu.matmul %0, %1, %cst_15 {dimension_numbers = #tpu.dot_dimension_numbers<[2], [1], [1], [2], [0, 0, 0, 1, 1, 2], [0], [0]>} : vector<8x8x8xf32>, vector<8x8x16xf32>, vector<8x8x16xf32> -> vector<8x8x16xf32>
    "tpu.trace_stop"() : () -> ()
    %8 = vector.shape_cast %7 : vector<8x8x16xf32> to vector<64x16xf32>
    %c0_16 = arith.constant 0 : index
    %c0_17 = arith.constant 0 : index
    %9 = vector.load %arg3[%c0_16, %c0_17] : memref<16x32xf32, #tpu.memory_space<vmem>>, vector<16x32xf32>
    %10 = vector.extract_strided_slice %2 {offsets = [0, 0, 0], sizes = [1, 32, 32], strides = [1, 1, 1]} : vector<3x32x32xf32> to vector<1x32x32xf32>
    %11 = vector.shape_cast %10 : vector<1x32x32xf32> to vector<32x32xf32>
    %cst_18 = arith.constant dense<0.000000e+00> : vector<64x32xf32>
    %12 = tpu.matmul %8, %9, %cst_18 {dimension_numbers = #tpu.dot_dimension_numbers<[1], [0], [0], [1], [0, 0, 1, 1], [], []>} : vector<64x16xf32>, vector<16x32xf32>, vector<64x32xf32> -> vector<64x32xf32>
    %13 = vector.extract_strided_slice %3 {offsets = [0, 0, 0], sizes = [1, 1, 32], strides = [1, 1, 1]} : vector<2x2x32xf32> to vector<1x1x32xf32>
    %14 = vector.shape_cast %13 : vector<1x1x32xf32> to vector<1x32xf32>
    %15 = vector.broadcast %14 : vector<1x32xf32> to vector<64x32xf32>
    %16 = arith.addf %12, %15 : vector<64x32xf32>
    %cst_19 = arith.constant 0.000000e+00 : f32
    %17 = vector.broadcast %cst_19 : f32 to vector<64x32xf32>
    %18 = arith.maximumf %16, %17 : vector<64x32xf32>
    %cst_20 = arith.constant dense<0.000000e+00> : vector<64x32xf32>
    %19 = tpu.matmul %18, %11, %cst_20 {dimension_numbers = #tpu.dot_dimension_numbers<[1], [0], [0], [1], [0, 0, 1, 1], [], []>} : vector<64x32xf32>, vector<32x32xf32>, vector<64x32xf32> -> vector<64x32xf32>
    %20 = vector.extract_strided_slice %3 {offsets = [0, 1, 0], sizes = [1, 1, 32], strides = [1, 1, 1]} : vector<2x2x32xf32> to vector<1x1x32xf32>
    %21 = vector.shape_cast %20 : vector<1x1x32xf32> to vector<1x32xf32>
    %22 = vector.broadcast %21 : vector<1x32xf32> to vector<64x32xf32>
    %23 = arith.addf %19, %22 : vector<64x32xf32>
    %cst_21 = arith.constant 0.000000e+00 : f32
    %24 = vector.broadcast %cst_21 : f32 to vector<64x32xf32>
    %25 = arith.maximumf %23, %24 : vector<64x32xf32>
    %26 = vector.shape_cast %25 : vector<64x32xf32> to vector<8x8x32xf32>
    %cst_22 = arith.constant dense<0.000000e+00> : vector<8x32xf32>
    %27 = vector.multi_reduction <add>, %26, %cst_22 [1] : vector<8x8x32xf32> to vector<8x32xf32>
    %28 = vector.extract_strided_slice %4 {offsets = [0, 0], sizes = [32, 32], strides = [1, 1]} : vector<64x32xf32> to vector<32x32xf32>
    %cst_23 = arith.constant dense<0.000000e+00> : vector<8x32xf32>
    %29 = tpu.matmul %27, %28, %cst_23 {dimension_numbers = #tpu.dot_dimension_numbers<[1], [0], [0], [1], [0, 0, 1, 1], [], []>} : vector<8x32xf32>, vector<32x32xf32>, vector<8x32xf32> -> vector<8x32xf32>
    %30 = arith.addf %6, %29 : vector<8x32xf32>
    "tpu.trace_start"() <{level = 10 : i32, message = "gij,gjf->gif"}> : () -> ()
    %cst_24 = arith.constant dense<0.000000e+00> : vector<8x8x32xf32>
    %31 = tpu.matmul %0, %26, %cst_24 {dimension_numbers = #tpu.dot_dimension_numbers<[2], [1], [1], [2], [0, 0, 0, 1, 1, 2], [0], [0]>} : vector<8x8x8xf32>, vector<8x8x32xf32>, vector<8x8x32xf32> -> vector<8x8x32xf32>
    "tpu.trace_stop"() : () -> ()
    %32 = vector.shape_cast %31 : vector<8x8x32xf32> to vector<64x32xf32>
    %33 = vector.extract_strided_slice %2 {offsets = [1, 0, 0], sizes = [1, 32, 32], strides = [1, 1, 1]} : vector<3x32x32xf32> to vector<1x32x32xf32>
    %34 = vector.shape_cast %33 : vector<1x32x32xf32> to vector<32x32xf32>
    %35 = vector.extract_strided_slice %2 {offsets = [2, 0, 0], sizes = [1, 32, 32], strides = [1, 1, 1]} : vector<3x32x32xf32> to vector<1x32x32xf32>
    %36 = vector.shape_cast %35 : vector<1x32x32xf32> to vector<32x32xf32>
    %cst_25 = arith.constant dense<0.000000e+00> : vector<64x32xf32>
    %37 = tpu.matmul %32, %34, %cst_25 {dimension_numbers = #tpu.dot_dimension_numbers<[1], [0], [0], [1], [0, 0, 1, 1], [], []>} : vector<64x32xf32>, vector<32x32xf32>, vector<64x32xf32> -> vector<64x32xf32>
    %38 = vector.extract_strided_slice %3 {offsets = [1, 0, 0], sizes = [1, 1, 32], strides = [1, 1, 1]} : vector<2x2x32xf32> to vector<1x1x32xf32>
    %39 = vector.shape_cast %38 : vector<1x1x32xf32> to vector<1x32xf32>
    %40 = vector.broadcast %39 : vector<1x32xf32> to vector<64x32xf32>
    %41 = arith.addf %37, %40 : vector<64x32xf32>
    %cst_26 = arith.constant 0.000000e+00 : f32
    %42 = vector.broadcast %cst_26 : f32 to vector<64x32xf32>
    %43 = arith.maximumf %41, %42 : vector<64x32xf32>
    %cst_27 = arith.constant dense<0.000000e+00> : vector<64x32xf32>
    %44 = tpu.matmul %43, %36, %cst_27 {dimension_numbers = #tpu.dot_dimension_numbers<[1], [0], [0], [1], [0, 0, 1, 1], [], []>} : vector<64x32xf32>, vector<32x32xf32>, vector<64x32xf32> -> vector<64x32xf32>
    %45 = vector.extract_strided_slice %3 {offsets = [1, 1, 0], sizes = [1, 1, 32], strides = [1, 1, 1]} : vector<2x2x32xf32> to vector<1x1x32xf32>
    %46 = vector.shape_cast %45 : vector<1x1x32xf32> to vector<1x32xf32>
    %47 = vector.broadcast %46 : vector<1x32xf32> to vector<64x32xf32>
    %48 = arith.addf %44, %47 : vector<64x32xf32>
    %cst_28 = arith.constant 0.000000e+00 : f32
    %49 = vector.broadcast %cst_28 : f32 to vector<64x32xf32>
    %50 = arith.maximumf %48, %49 : vector<64x32xf32>
    %51 = vector.shape_cast %50 : vector<64x32xf32> to vector<8x8x32xf32>
    %cst_29 = arith.constant dense<0.000000e+00> : vector<8x32xf32>
    %52 = vector.multi_reduction <add>, %51, %cst_29 [1] : vector<8x8x32xf32> to vector<8x32xf32>
    %53 = vector.extract_strided_slice %4 {offsets = [32, 0], sizes = [32, 32], strides = [1, 1]} : vector<64x32xf32> to vector<32x32xf32>
    %cst_30 = arith.constant dense<0.000000e+00> : vector<8x32xf32>
    %54 = tpu.matmul %52, %53, %cst_30 {dimension_numbers = #tpu.dot_dimension_numbers<[1], [0], [0], [1], [0, 0, 1, 1], [], []>} : vector<8x32xf32>, vector<32x32xf32>, vector<8x32xf32> -> vector<8x32xf32>
    %55 = arith.addf %30, %54 : vector<8x32xf32>
    %56 = vector.extract_strided_slice %5 {offsets = [0, 0], sizes = [1, 32], strides = [1, 1]} : vector<2x32xf32> to vector<1x32xf32>
    %57 = vector.broadcast %56 : vector<1x32xf32> to vector<8x32xf32>
    %58 = arith.addf %55, %57 : vector<8x32xf32>
    %cst_31 = arith.constant 0.000000e+00 : f32
    %59 = vector.broadcast %cst_31 : f32 to vector<8x32xf32>
    %60 = arith.maximumf %58, %59 : vector<8x32xf32>
    %c0_32 = arith.constant 0 : index
    %c0_33 = arith.constant 0 : index
    %61 = vector.load %arg7[%c0_32, %c0_33] : memref<32x32xf32, #tpu.memory_space<vmem>>, vector<32x32xf32>
    %cst_34 = arith.constant dense<0.000000e+00> : vector<8x32xf32>
    %62 = tpu.matmul %60, %61, %cst_34 {dimension_numbers = #tpu.dot_dimension_numbers<[1], [0], [0], [1], [0, 0, 1, 1], [], []>} : vector<8x32xf32>, vector<32x32xf32>, vector<8x32xf32> -> vector<8x32xf32>
    %63 = vector.extract_strided_slice %5 {offsets = [1, 0], sizes = [1, 32], strides = [1, 1]} : vector<2x32xf32> to vector<1x32xf32>
    %64 = vector.broadcast %63 : vector<1x32xf32> to vector<8x32xf32>
    %65 = arith.addf %62, %64 : vector<8x32xf32>
    %c0_35 = arith.constant 0 : index
    %c0_36 = arith.constant 0 : index
    %66 = vector.load %arg9[%c0_35, %c0_36] : memref<8x32xf32, #tpu.memory_space<vmem>>, vector<8x32xf32>
    tpu.vector_store %arg9[%c0_35, %c0_36], %65 {strides = array<i32>} : memref<8x32xf32, #tpu.memory_space<vmem>>, vector<8x32xf32>,
    return
  }
  func.func @transform_0(%arg0: i32) -> (i32, i32, i32) {
    %c0_i32 = arith.constant 0 : i32
    %c0_i32_0 = arith.constant 0 : i32
    %c0_i32_1 = arith.constant 0 : i32
    return %arg0, %c0_i32, %c0_i32_0 : i32, i32, i32
  }
  func.func @transform_1(%arg0: i32) -> (i32, i32, i32) {
    %c0_i32 = arith.constant 0 : i32
    %c0_i32_0 = arith.constant 0 : i32
    %c0_i32_1 = arith.constant 0 : i32
    return %arg0, %c0_i32, %c0_i32_0 : i32, i32, i32
  }
  func.func @transform_2(%arg0: i32) -> (i32, i32) {
    %c0_i32 = arith.constant 0 : i32
    %c0_i32_0 = arith.constant 0 : i32
    %c0_i32_1 = arith.constant 0 : i32
    return %c0_i32, %c0_i32_0 : i32, i32
  }
  func.func @transform_3(%arg0: i32) -> (i32, i32, i32) {
    %c0_i32 = arith.constant 0 : i32
    %c0_i32_0 = arith.constant 0 : i32
    %c0_i32_1 = arith.constant 0 : i32
    %c0_i32_2 = arith.constant 0 : i32
    return %c0_i32, %c0_i32_0, %c0_i32_1 : i32, i32, i32
  }
  func.func @transform_4(%arg0: i32) -> (i32, i32, i32) {
    %c0_i32 = arith.constant 0 : i32
    %c0_i32_0 = arith.constant 0 : i32
    %c0_i32_1 = arith.constant 0 : i32
    %c0_i32_2 = arith.constant 0 : i32
    return %c0_i32, %c0_i32_0, %c0_i32_1 : i32, i32, i32
  }
  func.func @transform_5(%arg0: i32) -> (i32, i32) {
    %c0_i32 = arith.constant 0 : i32
    %c0_i32_0 = arith.constant 0 : i32
    %c0_i32_1 = arith.constant 0 : i32
    return %c0_i32, %c0_i32_0 : i32, i32
  }
  func.func @transform_6(%arg0: i32) -> (i32, i32) {
    %c0_i32 = arith.constant 0 : i32
    %c0_i32_0 = arith.constant 0 : i32
    %c0_i32_1 = arith.constant 0 : i32
    return %c0_i32, %c0_i32_0 : i32, i32
  }
  func.func @transform_7(%arg0: i32) -> (i32, i32) {
    %c0_i32 = arith.constant 0 : i32
    %c0_i32_0 = arith.constant 0 : i32
    %c0_i32_1 = arith.constant 0 : i32
    return %c0_i32, %c0_i32_0 : i32, i32
  }
  func.func @transform_8(%arg0: i32) -> (i32, i32) {
    %c0_i32 = arith.constant 0 : i32
    %c0_i32_0 = arith.constant 0 : i32
    return %arg0, %c0_i32 : i32, i32
  }
}

</mosaic_0001>

<llo_original>
// kernel: tpu_custom_call.1
$region0: #{tpu_custom_call.1}
  #allocation0 [shape = 'u32[]', space=smem, size = 0x4, offset = 0x4, fixed_abs, tag = 'smem constant byte address 0x4 - core index']
  #allocation1 [shape = 'u32[144,128]{1,0:T(1,128)}', space=vmem, size = 0x12000, scoped, tag = 'internal scratch']
  %s0 = inlined_call_operand.vmem [shape: f32[16,8,8], index: 0, kind: input, shape index: {}]
  %s1 = inlined_call_operand.vmem [shape: f32[16,8,16], index: 1, kind: input, shape index: {}]
  %s2 = inlined_call_operand.vmem [shape: f32[16,32], index: 2, kind: input, shape index: {}]
  %s3 = inlined_call_operand.vmem [shape: f32[3,32,32], index: 3, kind: input, shape index: {}]
  %s4 = inlined_call_operand.vmem [shape: f32[2,2,32], index: 4, kind: input, shape index: {}]
  %s5 = inlined_call_operand.vmem [shape: f32[64,32], index: 5, kind: input, shape index: {}]
  %s6 = inlined_call_operand.vmem [shape: f32[32,32], index: 6, kind: input, shape index: {}]
  %s7 = inlined_call_operand.vmem [shape: f32[2,32], index: 7, kind: input, shape index: {}]
  %s8 = inlined_call_operand.hbm [shape: f32[16,32], index: 8, kind: output, shape index: {}]
  %s9 = sld [smem:[#allocation0]]
  $region65: #{tpu_custom_call.1} parent=0
    _
  %s11 = ssub.s32 1, %s9
  %s12 = scalar_select 0, %s11, %s9
  $region1: #{tpu_custom_call.1} parent=0
    #allocation2 [shape = 'u8[8192]{0}', space=vmem, size = 0x2000, scoped, tag = 'output window, operand 0']
    #allocation3 [shape = 's32[2]{0}', space=sflag, size = 0x8, scoped, tag = 'scoped memory for tpu_custom_call.1']
    %13 = vsyncpa [#allocation3], 0
    %s14 = scalar_lea.sflag [#allocation3], 1
    %15 = vsyncpa %s14, 0
    loop: start=0, step=1, limit=4
    $region2: #{tpu_custom_call.1} parent=1 // loop_pre_header
      _
    $region3: #{tpu_custom_call.1} parent=1 // loop_header
      %s17 = sphi 0, %s21
      %p18 = scmp.ge.s32.totalorder %s17, 4
      %s27 = sphi 0, %s29
      %s30 = sphi 0, %s27
      %s31 = sphi 0, %s30
      %s47 = sphi 0, %s31
      %s53 = sphi 0, %s55
      %s56 = sphi 0, %s53
      %s57 = sphi 0, %s56
      %s73 = sphi 0, %s57
      %s77 = sphi 0, %s77
      %s79 = sphi 0, %s77
      %s80 = sphi 0, %s79
      %s94 = sphi 0, %s80
      %s98 = sphi 0, %s98
      %s100 = sphi 0, %s98
      %s101 = sphi 0, %s100
      %s115 = sphi 0, %s101
      %s119 = sphi 0, %s119
      %s121 = sphi 0, %s119
      %s122 = sphi 0, %s121
      %s136 = sphi 0, %s122
      %s140 = sphi 0, %s140
      %s142 = sphi 0, %s140
      %s143 = sphi 0, %s142
      %s157 = sphi 0, %s143
      %s161 = sphi 0, %s161
      %s163 = sphi 0, %s161
      %s164 = sphi 0, %s163
      %s178 = sphi 0, %s164
      %s182 = sphi 0, %s182
      %s184 = sphi 0, %s182
      %s185 = sphi 0, %s184
      %s199 = sphi 0, %s185
      %s205 = sphi 0, %s207
      %s208 = sphi 0, %s205
      %s209 = sphi 0, %s208
      %s225 = sphi 0, %s209
    $region4: #{tpu_custom_call.1} parent=1 // loop_header_branch
      %20 = sbr.rel (%p18) target = $region8
    $region5: #{tpu_custom_call.1} parent=1 // loop_body
      %s22 = ssub.s32 %s17, 1
      %s23 = ssub.s32 %s17, 2
      %s24 = sadd.s32 %s17, 1
      %s25 = ssub.s32 %s17, %s24
      %p26 = scmp.eq.s32.totalorder %s25, 0
      %s28 = sadd.s32 %s27, 1
      %s29 = scalar_select %p26, %s27, %s28
      %p32 = pneg %p26
      %p33 = scmp.eq.s32.totalorder %s17, 1
      %p34 = por %p32, %p33
      %p35 = scmp.ne.s32.totalorder %s27, %s30
      %p36 = scmp.eq.s32.totalorder %s17, 0
      %p37 = por %p35, %p36
      %p38 = scmp.ne.s32.totalorder %s27, %s30
      %p39 = scmp.eq.s32.totalorder %s22, 1
      %p40 = por %p38, %p39
      %p41 = scmp.ne.s32.totalorder %s30, %s31
      %p42 = scmp.eq.s32.totalorder %s22, 0
      %p43 = por %p41, %p42
      %p44 = scmp.ne.s32.totalorder %s30, %s31
      %p45 = scmp.eq.s32.totalorder %s23, 1
      %p46 = por %p44, %p45
      %p48 = scmp.ne.s32.totalorder %s31, %s47
      %p49 = scmp.eq.s32.totalorder %s23, 0
      %p50 = por %p48, %p49
      %s51 = ssub.s32 %s17, %s24
      %p52 = scmp.eq.s32.totalorder %s51, 0
      %s54 = sadd.s32 %s53, 1
      %s55 = scalar_select %p52, %s53, %s54
      %p58 = pneg %p52
      %p59 = scmp.eq.s32.totalorder %s17, 1
      %p60 = por %p58, %p59
      %p61 = scmp.ne.s32.totalorder %s53, %s56
      %p62 = scmp.eq.s32.totalorder %s17, 0
      %p63 = por %p61, %p62
      %p64 = scmp.ne.s32.totalorder %s53, %s56
      %p65 = scmp.eq.s32.totalorder %s22, 1
      %p66 = por %p64, %p65
      %p67 = scmp.ne.s32.totalorder %s56, %s57
      %p68 = scmp.eq.s32.totalorder %s22, 0
      %p69 = por %p67, %p68
      %p70 = scmp.ne.s32.totalorder %s56, %s57
      %p71 = scmp.eq.s32.totalorder %s23, 1
      %p72 = por %p70, %p71
      %p74 = scmp.ne.s32.totalorder %s57, %s73
      %p75 = scmp.eq.s32.totalorder %s23, 0
      %p76 = por %p74, %p75
      %s78 = sadd.s32 %s77, 1
      %p81 = scmp.eq.s32.totalorder %s17, 1
      %p82 = scmp.ne.s32.totalorder %s77, %s79
      %p83 = scmp.eq.s32.totalorder %s17, 0
      %p84 = por %p82, %p83
      %p85 = scmp.ne.s32.totalorder %s77, %s79
      %p86 = scmp.eq.s32.totalorder %s22, 1
      %p87 = por %p85, %p86
      %p88 = scmp.ne.s32.totalorder %s79, %s80
      %p89 = scmp.eq.s32.totalorder %s22, 0
      %p90 = por %p88, %p89
      %p91 = scmp.ne.s32.totalorder %s79, %s80
      %p92 = scmp.eq.s32.totalorder %s23, 1
      %p93 = por %p91, %p92
      %p95 = scmp.ne.s32.totalorder %s80, %s94
      %p96 = scmp.eq.s32.totalorder %s23, 0
      %p97 = por %p95, %p96
      %s99 = sadd.s32 %s98, 1
      %p102 = scmp.eq.s32.totalorder %s17, 1
      %p103 = scmp.ne.s32.totalorder %s98, %s100
      %p104 = scmp.eq.s32.totalorder %s17, 0
      %p105 = por %p103, %p104
      %p106 = scmp.ne.s32.totalorder %s98, %s100
      %p107 = scmp.eq.s32.totalorder %s22, 1
      %p108 = por %p106, %p107
      %p109 = scmp.ne.s32.totalorder %s100, %s101
      %p110 = scmp.eq.s32.totalorder %s22, 0
      %p111 = por %p109, %p110
      %p112 = scmp.ne.s32.totalorder %s100, %s101
      %p113 = scmp.eq.s32.totalorder %s23, 1
      %p114 = por %p112, %p113
      %p116 = scmp.ne.s32.totalorder %s101, %s115
      %p117 = scmp.eq.s32.totalorder %s23, 0
      %p118 = por %p116, %p117
      %s120 = sadd.s32 %s119, 1
      %p123 = scmp.eq.s32.totalorder %s17, 1
      %p124 = scmp.ne.s32.totalorder %s119, %s121
      %p125 = scmp.eq.s32.totalorder %s17, 0
      %p126 = por %p124, %p125
      %p127 = scmp.ne.s32.totalorder %s119, %s121
      %p128 = scmp.eq.s32.totalorder %s22, 1
      %p129 = por %p127, %p128
      %p130 = scmp.ne.s32.totalorder %s121, %s122
      %p131 = scmp.eq.s32.totalorder %s22, 0
      %p132 = por %p130, %p131
      %p133 = scmp.ne.s32.totalorder %s121, %s122
      %p134 = scmp.eq.s32.totalorder %s23, 1
      %p135 = por %p133, %p134
      %p137 = scmp.ne.s32.totalorder %s122, %s136
      %p138 = scmp.eq.s32.totalorder %s23, 0
      %p139 = por %p137, %p138
      %s141 = sadd.s32 %s140, 1
      %p144 = scmp.eq.s32.totalorder %s17, 1
      %p145 = scmp.ne.s32.totalorder %s140, %s142
      %p146 = scmp.eq.s32.totalorder %s17, 0
      %p147 = por %p145, %p146
      %p148 = scmp.ne.s32.totalorder %s140, %s142
      %p149 = scmp.eq.s32.totalorder %s22, 1
      %p150 = por %p148, %p149
      %p151 = scmp.ne.s32.totalorder %s142, %s143
      %p152 = scmp.eq.s32.totalorder %s22, 0
      %p153 = por %p151, %p152
      %p154 = scmp.ne.s32.totalorder %s142, %s143
      %p155 = scmp.eq.s32.totalorder %s23, 1
      %p156 = por %p154, %p155
      %p158 = scmp.ne.s32.totalorder %s143, %s157
      %p159 = scmp.eq.s32.totalorder %s23, 0
      %p160 = por %p158, %p159
      %s162 = sadd.s32 %s161, 1
      %p165 = scmp.eq.s32.totalorder %s17, 1
      %p166 = scmp.ne.s32.totalorder %s161, %s163
      %p167 = scmp.eq.s32.totalorder %s17, 0
      %p168 = por %p166, %p167
      %p169 = scmp.ne.s32.totalorder %s161, %s163
      %p170 = scmp.eq.s32.totalorder %s22, 1
      %p171 = por %p169, %p170
      %p172 = scmp.ne.s32.totalorder %s163, %s164
      %p173 = scmp.eq.s32.totalorder %s22, 0
      %p174 = por %p172, %p173
      %p175 = scmp.ne.s32.totalorder %s163, %s164
      %p176 = scmp.eq.s32.totalorder %s23, 1
      %p177 = por %p175, %p176
      %p179 = scmp.ne.s32.totalorder %s164, %s178
      %p180 = scmp.eq.s32.totalorder %s23, 0
      %p181 = por %p179, %p180
      %s183 = sadd.s32 %s182, 1
      %p186 = scmp.eq.s32.totalorder %s17, 1
      %p187 = scmp.ne.s32.totalorder %s182, %s184
      %p188 = scmp.eq.s32.totalorder %s17, 0
      %p189 = por %p187, %p188
      %p190 = scmp.ne.s32.totalorder %s182, %s184
      %p191 = scmp.eq.s32.totalorder %s22, 1
      %p192 = por %p190, %p191
      %p193 = scmp.ne.s32.totalorder %s184, %s185
      %p194 = scmp.eq.s32.totalorder %s22, 0
      %p195 = por %p193, %p194
      %p196 = scmp.ne.s32.totalorder %s184, %s185
      %p197 = scmp.eq.s32.totalorder %s23, 1
      %p198 = por %p196, %p197
      %p200 = scmp.ne.s32.totalorder %s185, %s199
      %p201 = scmp.eq.s32.totalorder %s23, 0
      %p202 = por %p200, %p201
      %s203 = ssub.s32 %s17, %s24
      %p204 = scmp.eq.s32.totalorder %s203, 0
      %s206 = sadd.s32 %s205, 1
      %s207 = scalar_select %p204, %s205, %s206
      %p210 = pneg %p204
      %p211 = scmp.eq.s32.totalorder %s17, 1
      %p212 = por %p210, %p211
      %p213 = scmp.ne.s32.totalorder %s205, %s208
      %p214 = scmp.eq.s32.totalorder %s17, 0
      %p215 = por %p213, %p214
      %p216 = scmp.ne.s32.totalorder %s205, %s208
      %p217 = scmp.eq.s32.totalorder %s22, 1
      %p218 = por %p216, %p217
      %p219 = scmp.ne.s32.totalorder %s208, %s209
      %p220 = scmp.eq.s32.totalorder %s22, 0
      %p221 = por %p219, %p220
      %p222 = scmp.ne.s32.totalorder %s208, %s209
      %p223 = scmp.eq.s32.totalorder %s23, 1
      %p224 = por %p222, %p223
      %p226 = scmp.ne.s32.totalorder %s209, %s225
      %p227 = scmp.eq.s32.totalorder %s23, 0
      %p228 = por %p226, %p227
      %p229 = scmp.le.s32.totalorder 1, %s17
      %p230 = scmp.lt.s32.totalorder %s17, 3
      %p231 = pnand %p229, %p230
      %p232 = pneg %p231
      // Predicated region
      $region9: #{tpu_custom_call.1} parent=5 // pred_check
        _
      $region10: #{tpu_custom_call.1} parent=5 // pred_check_branch
        %234 = sbr.rel (%p231) target = $region12
      $region11: #{tpu_custom_call.1} parent=5 // pred_region
        %s235 = ssub.s32 %s17, 1
        // Predicated region
        $region13: #{tpu_custom_call.1} parent=11 // pred_check
          %p236 = pneg %p90
        $region14: #{tpu_custom_call.1} parent=11 // pred_check_branch
          %238 = sbr.rel (%p236) target = $region16
        $region15: #{tpu_custom_call.1} parent=11 // pred_region
          _
        $region16: #{tpu_custom_call.1} parent=11 // pred_fallthru
          _
        // Predicated region
        $region17: #{tpu_custom_call.1} parent=11 // pred_check
          %p239 = pneg %p111
        $region18: #{tpu_custom_call.1} parent=11 // pred_check_branch
          %241 = sbr.rel (%p239) target = $region20
        $region19: #{tpu_custom_call.1} parent=11 // pred_region
          _
        $region20: #{tpu_custom_call.1} parent=11 // pred_fallthru
          _
        // Predicated region
        $region21: #{tpu_custom_call.1} parent=11 // pred_check
          %p242 = pneg %p132
        $region22: #{tpu_custom_call.1} parent=11 // pred_check_branch
          %244 = sbr.rel (%p242) target = $region24
        $region23: #{tpu_custom_call.1} parent=11 // pred_region
          _
        $region24: #{tpu_custom_call.1} parent=11 // pred_fallthru
          _
        // Predicated region
        $region25: #{tpu_custom_call.1} parent=11 // pred_check
          %p245 = pneg %p153
        $region26: #{tpu_custom_call.1} parent=11 // pred_check_branch
          %247 = sbr.rel (%p245) target = $region28
        $region27: #{tpu_custom_call.1} parent=11 // pred_region
          _
        $region28: #{tpu_custom_call.1} parent=11 // pred_fallthru
          _
        // Predicated region
        $region29: #{tpu_custom_call.1} parent=11 // pred_check
          %p248 = pneg %p174
        $region30: #{tpu_custom_call.1} parent=11 // pred_check_branch
          %250 = sbr.rel (%p248) target = $region32
        $region31: #{tpu_custom_call.1} parent=11 // pred_region
          _
        $region32: #{tpu_custom_call.1} parent=11 // pred_fallthru
          _
        // Predicated region
        $region33: #{tpu_custom_call.1} parent=11 // pred_check
          %p251 = pneg %p195
        $region34: #{tpu_custom_call.1} parent=11 // pred_check_branch
          %253 = sbr.rel (%p251) target = $region36
        $region35: #{tpu_custom_call.1} parent=11 // pred_region
          _
        $region36: #{tpu_custom_call.1} parent=11 // pred_fallthru
          _
      $region12: #{tpu_custom_call.1} parent=5 // pred_fallthru
        _
      %p254 = scmp.lt.s32.totalorder %s17, 2
      // Predicated region
      $region37: #{tpu_custom_call.1} parent=5 // pred_check
        %p255 = pneg %p254
      $region38: #{tpu_custom_call.1} parent=5 // pred_check_branch
        %257 = sbr.rel (%p255) target = $region40
      $region39: #{tpu_custom_call.1} parent=5 // pred_region
        // Predicated region
        $region41: #{tpu_custom_call.1} parent=39 // pred_check
          %p258 = pneg %p37
        $region42: #{tpu_custom_call.1} parent=39 // pred_check_branch
          %260 = sbr.rel (%p258) target = $region44
        $region43: #{tpu_custom_call.1} parent=39 // pred_region
          %s261 = smul.u32 8, %s17
          %p262 = scmp.lt.s32.totalorder %s261, 15
          %s263 = scalar_select %p262, %s261, 15
          %s264 = smul.addr %s263, 8
          %s265 = scalar_lea.vmem %s0, %s264
          %s266 = smul.u32 8, %s17
        $region44: #{tpu_custom_call.1} parent=39 // pred_fallthru
          _
        // Predicated region
        $region45: #{tpu_custom_call.1} parent=39 // pred_check
          %p267 = pneg %p63
        $region46: #{tpu_custom_call.1} parent=39 // pred_check_branch
          %269 = sbr.rel (%p267) target = $region48
        $region47: #{tpu_custom_call.1} parent=39 // pred_region
          %s270 = smul.u32 8, %s17
          %p271 = scmp.lt.s32.totalorder %s270, 15
          %s272 = scalar_select %p271, %s270, 15
          %s273 = smul.addr %s272, 8
          %s274 = scalar_lea.vmem %s1, %s273
          %s275 = smul.u32 8, %s17
        $region48: #{tpu_custom_call.1} parent=39 // pred_fallthru
          _
      $region40: #{tpu_custom_call.1} parent=5 // pred_fallthru
        _
      %p276 = scmp.le.s32.totalorder 1, %s17
      %p277 = scmp.lt.s32.totalorder %s17, 3
      %p278 = pnand %p276, %p277
      %p279 = pneg %p278
      // Predicated region
      $region49: #{tpu_custom_call.1} parent=5 // pred_check
        _
      $region50: #{tpu_custom_call.1} parent=5 // pred_check_branch
        %281 = sbr.rel (%p278) target = $region52
      $region51: #{tpu_custom_call.1} parent=5 // pred_region
        %s282 = ssub.s32 %s17, 1
        %s283 = smul.u32 8, %s22
        %p284 = scmp.lt.s32.totalorder %s283, 15
        %s285 = scalar_select %p284, %s283, 15
        %s286 = smul.addr %s285, 8
        %s287 = scalar_lea.vmem %s0, %s286
        %p288 = pneg %p43
        %p289 = pneg %p40
        %s290 = smul.u32 8, %s22
        %p291 = scmp.lt.s32.totalorder %s290, 15
        %s292 = scalar_select %p291, %s290, 15
        %s293 = smul.addr %s292, 8
        %s294 = scalar_lea.vmem %s1, %s293
        %p295 = pneg %p69
        %p296 = pneg %p66
        %p297 = pneg %p90
        %p298 = pneg %p87
        %p299 = pneg %p111
        %p300 = pneg %p108
        %p301 = pneg %p132
        %p302 = pneg %p129
        %p303 = pneg %p153
        %p304 = pneg %p150
        %p305 = pneg %p174
        %p306 = pneg %p171
        %p307 = pneg %p195
        %p308 = pneg %p192
        %p309 = pneg %p221
        %p310 = pneg %p218
        %s311 = sand.u32 %s208, 1
        %s312 = scalar_lea.sflag [#allocation3], %s311
        %s313 = sand.u32 %s208, 1
        %s314 = smul.addr %s313, 8
        %s315 = scalar_lea.vmem [#allocation2], %s314
        %s316 = smul.u32 8, %s22
        %p317 = scmp.lt.s32.totalorder %s316, 15
        %s318 = scalar_select %p317, %s316, 15
        %s319 = smul.addr %s318, 8
        %s320 = scalar_lea.vmem %s0, %s319
        %s321 = smul.u32 8, %s22
        %s322 = smul.u32 8, %s22
        %p323 = scmp.lt.s32.totalorder %s322, 15
        %s324 = scalar_select %p323, %s322, 15
        %s325 = smul.addr %s324, 8
        %s326 = scalar_lea.vmem %s1, %s325
        %s327 = smul.u32 8, %s22
        %v328 = vld [vmem:[%s320] sm:$0xff]
        %v329 = vld [vmem:[%s320 + $0x8] sm:$0xff]
        %v330 = vld [vmem:[%s320 + $0x10] sm:$0xff]
        %v331 = vld [vmem:[%s320 + $0x18] sm:$0xff]
        %v332 = vld [vmem:[%s320 + $0x20] sm:$0xff]
        %v333 = vld [vmem:[%s320 + $0x28] sm:$0xff]
        %v334 = vld [vmem:[%s320 + $0x30] sm:$0xff]
        %v335 = vld [vmem:[%s320 + $0x38] sm:$0xff]
        %v336 = vld [vmem:[%s326] sm:$0xff]
        %v337 = vld [vmem:[%s326 + $0x8] sm:$0xff]
        %v338 = vld [vmem:[%s326 + $0x10] sm:$0xff]
        %v339 = vld [vmem:[%s326 + $0x18] sm:$0xff]
        %v340 = vld [vmem:[%s326 + $0x20] sm:$0xff]
        %v341 = vld [vmem:[%s326 + $0x28] sm:$0xff]
        %v342 = vld [vmem:[%s326 + $0x30] sm:$0xff]
        %v343 = vld [vmem:[%s326 + $0x38] sm:$0xff]
        %v344 = vld [vmem:[%s3] sm:$0xff]
        %v345 = vld [vmem:[%s3 + $0x8] sm:$0xff]
        %v346 = vld [vmem:[%s3 + $0x10] sm:$0xff]
        %v347 = vld [vmem:[%s3 + $0x18] sm:$0xff]
        %v348 = vld [vmem:[%s3 + $0x20] sm:$0xff]
        %v349 = vld [vmem:[%s3 + $0x28] sm:$0xff]
        %v350 = vld [vmem:[%s3 + $0x30] sm:$0xff]
        %v351 = vld [vmem:[%s3 + $0x38] sm:$0xff]
        %v352 = vld [vmem:[%s3 + $0x40] sm:$0xff]
        %v353 = vld [vmem:[%s3 + $0x48] sm:$0xff]
        %v354 = vld [vmem:[%s3 + $0x50] sm:$0xff]
        %v355 = vld [vmem:[%s3 + $0x58] sm:$0xff]
        %v356 = vld [vmem:[%s4] sm:$0x3]
        %v357 = vld [vmem:[%s4 + $0x2] sm:$0x3]
        %v358 = vld [vmem:[%s5] sm:$0xff]
        %v359 = vld [vmem:[%s5 + $0x8] sm:$0xff]
        %v360 = vld [vmem:[%s5 + $0x10] sm:$0xff]
        %v361 = vld [vmem:[%s5 + $0x18] sm:$0xff]
        %v362 = vld [vmem:[%s5 + $0x20] sm:$0xff]
        %v363 = vld [vmem:[%s5 + $0x28] sm:$0xff]
        %v364 = vld [vmem:[%s5 + $0x30] sm:$0xff]
        %v365 = vld [vmem:[%s5 + $0x38] sm:$0xff]
        %v366 = vld [vmem:[%s7] sm:$0x3]
        %vm367 = vcmask 64512
        %v369 = vsel %vm367, %v328, 0
        %371 = vmatprep.subr.mxu0 0.0
        %372 = vmatpush1.msra.mxu0 0.0
        %373 = vmatprep.subr.mxu0 0.0
        %374 = vmatpush1.msra.mxu0 0.0
        %375 = vmatprep.subr.mxu0 0.0
        %376 = vmatpush1.msra.mxu0 0.0
        %377 = vmatprep.subr.mxu0 0.0
        %378 = vmatpush1.msra.mxu0 0.0
        %379 = vmatprep.subr.mxu0 0.0
        %380 = vmatpush1.msra.mxu0 0.0
        %381 = vmatprep.subr.mxu0 0.0
        %382 = vmatpush1.msra.mxu0 0.0
        %383 = vmatprep.subr.mxu0 0.0
        %384 = vmatpush1.msra.mxu0 0.0
        %385 = vmatprep.subr.mxu0 0.0
        %386 = vmatpush1.msra.mxu0 0.0
        %387 = vmatprep.subr.mxu0 0.0
        %388 = vmatpush1.msra.mxu0 0.0
        %389 = vmatprep.subr.mxu0 0.0
        %390 = vmatpush1.msra.mxu0 0.0
        %391 = vmatprep.subr.mxu0 0.0
        %392 = vmatpush1.msra.mxu0 0.0
        %393 = vmatprep.subr.mxu0 0.0
        %394 = vmatpush1.msra.mxu0 0.0
        %395 = vmatprep.subr.mxu0 0.0
        %396 = vmatpush1.msra.mxu0 0.0
        %397 = vmatprep.subr.mxu0 0.0
        %398 = vmatpush1.msra.mxu0 0.0
        %399 = vmatprep.subr.mxu0 0.0
        %400 = vmatpush1.msra.mxu0 0.0
        %401 = vmatprep.subr.mxu0 0.0
        %402 = vmatpush1.msra.mxu0 %v336
        %403 = vmatprep.subr.mxu0 0.0
        %404 = vmatpush2.msra.mxu0 0.0
        %405 = vmatprep.subr.mxu0 0.0
        %406 = vmatpush2.msra.mxu0 0.0
        %407 = vmatprep.subr.mxu0 0.0
        %408 = vmatpush2.msra.mxu0 0.0
        %409 = vmatprep.subr.mxu0 0.0
        %410 = vmatpush2.msra.mxu0 0.0
        %411 = vmatprep.subr.mxu0 0.0
        %412 = vmatpush2.msra.mxu0 0.0
        %413 = vmatprep.subr.mxu0 0.0
        %414 = vmatpush2.msra.mxu0 0.0
        %415 = vmatprep.subr.mxu0 0.0
        %416 = vmatpush2.msra.mxu0 0.0
        %417 = vmatprep.subr.mxu0 0.0
        %418 = vmatpush2.msra.mxu0 0.0
        %419 = vmatprep.subr.mxu0 0.0
        %420 = vmatpush2.msra.mxu0 0.0
        %421 = vmatprep.subr.mxu0 0.0
        %422 = vmatpush2.msra.mxu0 0.0
        %423 = vmatprep.subr.mxu0 0.0
        %424 = vmatpush2.msra.mxu0 0.0
        %425 = vmatprep.subr.mxu0 0.0
        %426 = vmatpush2.msra.mxu0 0.0
        %427 = vmatprep.subr.mxu0 0.0
        %428 = vmatpush2.msra.mxu0 0.0
        %429 = vmatprep.subr.mxu0 0.0
        %430 = vmatpush2.msra.mxu0 0.0
        %431 = vmatprep.subr.mxu0 0.0
        %432 = vmatpush2.msra.mxu0 0.0
        %433 = vmatprep.subr.mxu0 0.0
        %434 = vmatpush2.msra.mxu0 0.0
        %435 = vmatprep.mubr.f32.mxu0 0.0
        %436 = vmatmul.mubr.f32.gmra.mxu0 %v369
        %v437 = vpop.f32.mrf.mxu0
        %v438 = vadd.f32 0.0, %v437
        %v439 = vpop.f32.mrf.mxu0
        %440 = vdwg.mxu0
        %v442 = vsel %vm367, %v329, 0
        %444 = vmatprep.subr.mxu0 0.0
        %445 = vmatpush1.msra.mxu0 0.0
        %446 = vmatprep.subr.mxu0 0.0
        %447 = vmatpush1.msra.mxu0 0.0
        %448 = vmatprep.subr.mxu0 0.0
        %449 = vmatpush1.msra.mxu0 0.0
        %450 = vmatprep.subr.mxu0 0.0
        %451 = vmatpush1.msra.mxu0 0.0
        %452 = vmatprep.subr.mxu0 0.0
        %453 = vmatpush1.msra.mxu0 0.0
        %454 = vmatprep.subr.mxu0 0.0
        %455 = vmatpush1.msra.mxu0 0.0
        %456 = vmatprep.subr.mxu0 0.0
        %457 = vmatpush1.msra.mxu0 0.0
        %458 = vmatprep.subr.mxu0 0.0
        %459 = vmatpush1.msra.mxu0 0.0
        %460 = vmatprep.subr.mxu0 0.0
        %461 = vmatpush1.msra.mxu0 0.0
        %462 = vmatprep.subr.mxu0 0.0
        %463 = vmatpush1.msra.mxu0 0.0
        %464 = vmatprep.subr.mxu0 0.0
        %465 = vmatpush1.msra.mxu0 0.0
        %466 = vmatprep.subr.mxu0 0.0
        %467 = vmatpush1.msra.mxu0 0.0
        %468 = vmatprep.subr.mxu0 0.0
        %469 = vmatpush1.msra.mxu0 0.0
        %470 = vmatprep.subr.mxu0 0.0
        %471 = vmatpush1.msra.mxu0 0.0
        %472 = vmatprep.subr.mxu0 0.0
        %473 = vmatpush1.msra.mxu0 0.0
        %474 = vmatprep.subr.mxu0 0.0
        %475 = vmatpush1.msra.mxu0 %v337
        %476 = vmatprep.subr.mxu0 0.0
        %477 = vmatpush2.msra.mxu0 0.0
        %478 = vmatprep.subr.mxu0 0.0
        %479 = vmatpush2.msra.mxu0 0.0
        %480 = vmatprep.subr.mxu0 0.0
        %481 = vmatpush2.msra.mxu0 0.0
        %482 = vmatprep.subr.mxu0 0.0
        %483 = vmatpush2.msra.mxu0 0.0
        %484 = vmatprep.subr.mxu0 0.0
        %485 = vmatpush2.msra.mxu0 0.0
        %486 = vmatprep.subr.mxu0 0.0
        %487 = vmatpush2.msra.mxu0 0.0
        %488 = vmatprep.subr.mxu0 0.0
        %489 = vmatpush2.msra.mxu0 0.0
        %490 = vmatprep.subr.mxu0 0.0
        %491 = vmatpush2.msra.mxu0 0.0
        %492 = vmatprep.subr.mxu0 0.0
        %493 = vmatpush2.msra.mxu0 0.0
        %494 = vmatprep.subr.mxu0 0.0
        %495 = vmatpush2.msra.mxu0 0.0
        %496 = vmatprep.subr.mxu0 0.0
        %497 = vmatpush2.msra.mxu0 0.0
        %498 = vmatprep.subr.mxu0 0.0
        %499 = vmatpush2.msra.mxu0 0.0
        %500 = vmatprep.subr.mxu0 0.0
        %501 = vmatpush2.msra.mxu0 0.0
        %502 = vmatprep.subr.mxu0 0.0
        %503 = vmatpush2.msra.mxu0 0.0
        %504 = vmatprep.subr.mxu0 0.0
        %505 = vmatpush2.msra.mxu0 0.0
        %506 = vmatprep.subr.mxu0 0.0
        %507 = vmatpush2.msra.mxu0 0.0
        %508 = vmatprep.mubr.f32.mxu0 0.0
        %509 = vmatmul.mubr.f32.gmra.mxu0 %v442
        %v510 = vpop.f32.mrf.mxu0
        %v511 = vadd.f32 0.0, %v510
        %v512 = vpop.f32.mrf.mxu0
        %513 = vdwg.mxu0
        %v515 = vsel %vm367, %v330, 0
        %517 = vmatprep.subr.mxu0 0.0
        %518 = vmatpush1.msra.mxu0 0.0
        %519 = vmatprep.subr.mxu0 0.0
        %520 = vmatpush1.msra.mxu0 0.0
        %521 = vmatprep.subr.mxu0 0.0
        %522 = vmatpush1.msra.mxu0 0.0
        %523 = vmatprep.subr.mxu0 0.0
        %524 = vmatpush1.msra.mxu0 0.0
        %525 = vmatprep.subr.mxu0 0.0
        %526 = vmatpush1.msra.mxu0 0.0
        %527 = vmatprep.subr.mxu0 0.0
        %528 = vmatpush1.msra.mxu0 0.0
        %529 = vmatprep.subr.mxu0 0.0
        %530 = vmatpush1.msra.mxu0 0.0
        %531 = vmatprep.subr.mxu0 0.0
        %532 = vmatpush1.msra.mxu0 0.0
        %533 = vmatprep.subr.mxu0 0.0
        %534 = vmatpush1.msra.mxu0 0.0
        %535 = vmatprep.subr.mxu0 0.0
        %536 = vmatpush1.msra.mxu0 0.0
        %537 = vmatprep.subr.mxu0 0.0
        %538 = vmatpush1.msra.mxu0 0.0
        %539 = vmatprep.subr.mxu0 0.0
        %540 = vmatpush1.msra.mxu0 0.0
        %541 = vmatprep.subr.mxu0 0.0
        %542 = vmatpush1.msra.mxu0 0.0
        %543 = vmatprep.subr.mxu0 0.0
        %544 = vmatpush1.msra.mxu0 0.0
        %545 = vmatprep.subr.mxu0 0.0
        %546 = vmatpush1.msra.mxu0 0.0
        %547 = vmatprep.subr.mxu0 0.0
        %548 = vmatpush1.msra.mxu0 %v338
        %549 = vmatprep.subr.mxu0 0.0
        %550 = vmatpush2.msra.mxu0 0.0
        %551 = vmatprep.subr.mxu0 0.0
        %552 = vmatpush2.msra.mxu0 0.0
        %553 = vmatprep.subr.mxu0 0.0
        %554 = vmatpush2.msra.mxu0 0.0
        %555 = vmatprep.subr.mxu0 0.0
        %556 = vmatpush2.msra.mxu0 0.0
        %557 = vmatprep.subr.mxu0 0.0
        %558 = vmatpush2.msra.mxu0 0.0
        %559 = vmatprep.subr.mxu0 0.0
        %560 = vmatpush2.msra.mxu0 0.0
        %561 = vmatprep.subr.mxu0 0.0
        %562 = vmatpush2.msra.mxu0 0.0
        %563 = vmatprep.subr.mxu0 0.0
        %564 = vmatpush2.msra.mxu0 0.0
        %565 = vmatprep.subr.mxu0 0.0
        %566 = vmatpush2.msra.mxu0 0.0
        %567 = vmatprep.subr.mxu0 0.0
        %568 = vmatpush2.msra.mxu0 0.0
        %569 = vmatprep.subr.mxu0 0.0
        %570 = vmatpush2.msra.mxu0 0.0
        %571 = vmatprep.subr.mxu0 0.0
        %572 = vmatpush2.msra.mxu0 0.0
        %573 = vmatprep.subr.mxu0 0.0
        %574 = vmatpush2.msra.mxu0 0.0
        %575 = vmatprep.subr.mxu0 0.0
        %576 = vmatpush2.msra.mxu0 0.0
        %577 = vmatprep.subr.mxu0 0.0
        %578 = vmatpush2.msra.mxu0 0.0
        %579 = vmatprep.subr.mxu0 0.0
        %580 = vmatpush2.msra.mxu0 0.0
        %581 = vmatprep.mubr.f32.mxu0 0.0
        %582 = vmatmul.mubr.f32.gmra.mxu0 %v515
        %v583 = vpop.f32.mrf.mxu0
        %v584 = vadd.f32 0.0, %v583
        %v585 = vpop.f32.mrf.mxu0
        %586 = vdwg.mxu0
        %v588 = vsel %vm367, %v331, 0
        %590 = vmatprep.subr.mxu0 0.0
        %591 = vmatpush1.msra.mxu0 0.0
        %592 = vmatprep.subr.mxu0 0.0
        %593 = vmatpush1.msra.mxu0 0.0
        %594 = vmatprep.subr.mxu0 0.0
        %595 = vmatpush1.msra.mxu0 0.0
        %596 = vmatprep.subr.mxu0 0.0
        %597 = vmatpush1.msra.mxu0 0.0
        %598 = vmatprep.subr.mxu0 0.0
        %599 = vmatpush1.msra.mxu0 0.0
        %600 = vmatprep.subr.mxu0 0.0
        %601 = vmatpush1.msra.mxu0 0.0
        %602 = vmatprep.subr.mxu0 0.0
        %603 = vmatpush1.msra.mxu0 0.0
        %604 = vmatprep.subr.mxu0 0.0
        %605 = vmatpush1.msra.mxu0 0.0
        %606 = vmatprep.subr.mxu0 0.0
        %607 = vmatpush1.msra.mxu0 0.0
        %608 = vmatprep.subr.mxu0 0.0
        %609 = vmatpush1.msra.mxu0 0.0
        %610 = vmatprep.subr.mxu0 0.0
        %611 = vmatpush1.msra.mxu0 0.0
        %612 = vmatprep.subr.mxu0 0.0
        %613 = vmatpush1.msra.mxu0 0.0
        %614 = vmatprep.subr.mxu0 0.0
        %615 = vmatpush1.msra.mxu0 0.0
        %616 = vmatprep.subr.mxu0 0.0
        %617 = vmatpush1.msra.mxu0 0.0
        %618 = vmatprep.subr.mxu0 0.0
        %619 = vmatpush1.msra.mxu0 0.0
        %620 = vmatprep.subr.mxu0 0.0
        %621 = vmatpush1.msra.mxu0 %v339
        %622 = vmatprep.subr.mxu0 0.0
        %623 = vmatpush2.msra.mxu0 0.0
        %624 = vmatprep.subr.mxu0 0.0
        %625 = vmatpush2.msra.mxu0 0.0
        %626 = vmatprep.subr.mxu0 0.0
        %627 = vmatpush2.msra.mxu0 0.0
        %628 = vmatprep.subr.mxu0 0.0
        %629 = vmatpush2.msra.mxu0 0.0
        %630 = vmatprep.subr.mxu0 0.0
        %631 = vmatpush2.msra.mxu0 0.0
        %632 = vmatprep.subr.mxu0 0.0
        %633 = vmatpush2.msra.mxu0 0.0
        %634 = vmatprep.subr.mxu0 0.0
        %635 = vmatpush2.msra.mxu0 0.0
        %636 = vmatprep.subr.mxu0 0.0
        %637 = vmatpush2.msra.mxu0 0.0
        %638 = vmatprep.subr.mxu0 0.0
        %639 = vmatpush2.msra.mxu0 0.0
        %640 = vmatprep.subr.mxu0 0.0
        %641 = vmatpush2.msra.mxu0 0.0
        %642 = vmatprep.subr.mxu0 0.0
        %643 = vmatpush2.msra.mxu0 0.0
        %644 = vmatprep.subr.mxu0 0.0
        %645 = vmatpush2.msra.mxu0 0.0
        %646 = vmatprep.subr.mxu0 0.0
        %647 = vmatpush2.msra.mxu0 0.0
        %648 = vmatprep.subr.mxu0 0.0
        %649 = vmatpush2.msra.mxu0 0.0
        %650 = vmatprep.subr.mxu0 0.0
        %651 = vmatpush2.msra.mxu0 0.0
        %652 = vmatprep.subr.mxu0 0.0
        %653 = vmatpush2.msra.mxu0 0.0
        %654 = vmatprep.mubr.f32.mxu0 0.0
        %655 = vmatmul.mubr.f32.gmra.mxu0 %v588
        %v656 = vpop.f32.mrf.mxu0
        %v657 = vadd.f32 0.0, %v656
        %v658 = vpop.f32.mrf.mxu0
        %659 = vdwg.mxu0
        %v661 = vsel %vm367, %v332, 0
        %663 = vmatprep.subr.mxu0 0.0
        %664 = vmatpush1.msra.mxu0 0.0
        %665 = vmatprep.subr.mxu0 0.0
        %666 = vmatpush1.msra.mxu0 0.0
        %667 = vmatprep.subr.mxu0 0.0
        %668 = vmatpush1.msra.mxu0 0.0
        %669 = vmatprep.subr.mxu0 0.0
        %670 = vmatpush1.msra.mxu0 0.0
        %671 = vmatprep.subr.mxu0 0.0
        %672 = vmatpush1.msra.mxu0 0.0
        %673 = vmatprep.subr.mxu0 0.0
        %674 = vmatpush1.msra.mxu0 0.0
        %675 = vmatprep.subr.mxu0 0.0
        %676 = vmatpush1.msra.mxu0 0.0
        %677 = vmatprep.subr.mxu0 0.0
        %678 = vmatpush1.msra.mxu0 0.0
        %679 = vmatprep.subr.mxu0 0.0
        %680 = vmatpush1.msra.mxu0 0.0
        %681 = vmatprep.subr.mxu0 0.0
        %682 = vmatpush1.msra.mxu0 0.0
        %683 = vmatprep.subr.mxu0 0.0
        %684 = vmatpush1.msra.mxu0 0.0
        %685 = vmatprep.subr.mxu0 0.0
        %686 = vmatpush1.msra.mxu0 0.0
        %687 = vmatprep.subr.mxu0 0.0
        %688 = vmatpush1.msra.mxu0 0.0
        %689 = vmatprep.subr.mxu0 0.0
        %690 = vmatpush1.msra.mxu0 0.0
        %691 = vmatprep.subr.mxu0 0.0
        %692 = vmatpush1.msra.mxu0 0.0
        %693 = vmatprep.subr.mxu0 0.0
        %694 = vmatpush1.msra.mxu0 %v340
        %695 = vmatprep.subr.mxu0 0.0
        %696 = vmatpush2.msra.mxu0 0.0
        %697 = vmatprep.subr.mxu0 0.0
        %698 = vmatpush2.msra.mxu0 0.0
        %699 = vmatprep.subr.mxu0 0.0
        %700 = vmatpush2.msra.mxu0 0.0
        %701 = vmatprep.subr.mxu0 0.0
        %702 = vmatpush2.msra.mxu0 0.0
        %703 = vmatprep.subr.mxu0 0.0
        %704 = vmatpush2.msra.mxu0 0.0
        %705 = vmatprep.subr.mxu0 0.0
        %706 = vmatpush2.msra.mxu0 0.0
        %707 = vmatprep.subr.mxu0 0.0
        %708 = vmatpush2.msra.mxu0 0.0
        %709 = vmatprep.subr.mxu0 0.0
        %710 = vmatpush2.msra.mxu0 0.0
        %711 = vmatprep.subr.mxu0 0.0
        %712 = vmatpush2.msra.mxu0 0.0
        %713 = vmatprep.subr.mxu0 0.0
        %714 = vmatpush2.msra.mxu0 0.0
        %715 = vmatprep.subr.mxu0 0.0
        %716 = vmatpush2.msra.mxu0 0.0
        %717 = vmatprep.subr.mxu0 0.0
        %718 = vmatpush2.msra.mxu0 0.0
        %719 = vmatprep.subr.mxu0 0.0
        %720 = vmatpush2.msra.mxu0 0.0
        %721 = vmatprep.subr.mxu0 0.0
        %722 = vmatpush2.msra.mxu0 0.0
        %723 = vmatprep.subr.mxu0 0.0
        %724 = vmatpush2.msra.mxu0 0.0
        %725 = vmatprep.subr.mxu0 0.0
        %726 = vmatpush2.msra.mxu0 0.0
        %727 = vmatprep.mubr.f32.mxu0 0.0
        %728 = vmatmul.mubr.f32.gmra.mxu0 %v661
        %v729 = vpop.f32.mrf.mxu0
        %v730 = vadd.f32 0.0, %v729
        %v731 = vpop.f32.mrf.mxu0
        %732 = vdwg.mxu0
        %v734 = vsel %vm367, %v333, 0
        %736 = vmatprep.subr.mxu0 0.0
        %737 = vmatpush1.msra.mxu0 0.0
        %738 = vmatprep.subr.mxu0 0.0
        %739 = vmatpush1.msra.mxu0 0.0
        %740 = vmatprep.subr.mxu0 0.0
        %741 = vmatpush1.msra.mxu0 0.0
        %742 = vmatprep.subr.mxu0 0.0
        %743 = vmatpush1.msra.mxu0 0.0
        %744 = vmatprep.subr.mxu0 0.0
        %745 = vmatpush1.msra.mxu0 0.0
        %746 = vmatprep.subr.mxu0 0.0
        %747 = vmatpush1.msra.mxu0 0.0
        %748 = vmatprep.subr.mxu0 0.0
        %749 = vmatpush1.msra.mxu0 0.0
        %750 = vmatprep.subr.mxu0 0.0
        %751 = vmatpush1.msra.mxu0 0.0
        %752 = vmatprep.subr.mxu0 0.0
        %753 = vmatpush1.msra.mxu0 0.0
        %754 = vmatprep.subr.mxu0 0.0
        %755 = vmatpush1.msra.mxu0 0.0
        %756 = vmatprep.subr.mxu0 0.0
        %757 = vmatpush1.msra.mxu0 0.0
        %758 = vmatprep.subr.mxu0 0.0
        %759 = vmatpush1.msra.mxu0 0.0
        %760 = vmatprep.subr.mxu0 0.0
        %761 = vmatpush1.msra.mxu0 0.0
        %762 = vmatprep.subr.mxu0 0.0
        %763 = vmatpush1.msra.mxu0 0.0
        %764 = vmatprep.subr.mxu0 0.0
        %765 = vmatpush1.msra.mxu0 0.0
        %766 = vmatprep.subr.mxu0 0.0
        %767 = vmatpush1.msra.mxu0 %v341
        %768 = vmatprep.subr.mxu0 0.0
        %769 = vmatpush2.msra.mxu0 0.0
        %770 = vmatprep.subr.mxu0 0.0
        %771 = vmatpush2.msra.mxu0 0.0
        %772 = vmatprep.subr.mxu0 0.0
        %773 = vmatpush2.msra.mxu0 0.0
        %774 = vmatprep.subr.mxu0 0.0
        %775 = vmatpush2.msra.mxu0 0.0
        %776 = vmatprep.subr.mxu0 0.0
        %777 = vmatpush2.msra.mxu0 0.0
        %778 = vmatprep.subr.mxu0 0.0
        %779 = vmatpush2.msra.mxu0 0.0
        %780 = vmatprep.subr.mxu0 0.0
        %781 = vmatpush2.msra.mxu0 0.0
        %782 = vmatprep.subr.mxu0 0.0
        %783 = vmatpush2.msra.mxu0 0.0
        %784 = vmatprep.subr.mxu0 0.0
        %785 = vmatpush2.msra.mxu0 0.0
        %786 = vmatprep.subr.mxu0 0.0
        %787 = vmatpush2.msra.mxu0 0.0
        %788 = vmatprep.subr.mxu0 0.0
        %789 = vmatpush2.msra.mxu0 0.0
        %790 = vmatprep.subr.mxu0 0.0
        %791 = vmatpush2.msra.mxu0 0.0
        %792 = vmatprep.subr.mxu0 0.0
        %793 = vmatpush2.msra.mxu0 0.0
        %794 = vmatprep.subr.mxu0 0.0
        %795 = vmatpush2.msra.mxu0 0.0
        %796 = vmatprep.subr.mxu0 0.0
        %797 = vmatpush2.msra.mxu0 0.0
        %798 = vmatprep.subr.mxu0 0.0
        %799 = vmatpush2.msra.mxu0 0.0
        %800 = vmatprep.mubr.f32.mxu0 0.0
        %801 = vmatmul.mubr.f32.gmra.mxu0 %v734
        %v802 = vpop.f32.mrf.mxu0
        %v803 = vadd.f32 0.0, %v802
        %v804 = vpop.f32.mrf.mxu0
        %805 = vdwg.mxu0
        %v807 = vsel %vm367, %v334, 0
        %809 = vmatprep.subr.mxu0 0.0
        %810 = vmatpush1.msra.mxu0 0.0
        %811 = vmatprep.subr.mxu0 0.0
        %812 = vmatpush1.msra.mxu0 0.0
        %813 = vmatprep.subr.mxu0 0.0
        %814 = vmatpush1.msra.mxu0 0.0
        %815 = vmatprep.subr.mxu0 0.0
        %816 = vmatpush1.msra.mxu0 0.0
        %817 = vmatprep.subr.mxu0 0.0
        %818 = vmatpush1.msra.mxu0 0.0
        %819 = vmatprep.subr.mxu0 0.0
        %820 = vmatpush1.msra.mxu0 0.0
        %821 = vmatprep.subr.mxu0 0.0
        %822 = vmatpush1.msra.mxu0 0.0
        %823 = vmatprep.subr.mxu0 0.0
        %824 = vmatpush1.msra.mxu0 0.0
        %825 = vmatprep.subr.mxu0 0.0
        %826 = vmatpush1.msra.mxu0 0.0
        %827 = vmatprep.subr.mxu0 0.0
        %828 = vmatpush1.msra.mxu0 0.0
        %829 = vmatprep.subr.mxu0 0.0
        %830 = vmatpush1.msra.mxu0 0.0
        %831 = vmatprep.subr.mxu0 0.0
        %832 = vmatpush1.msra.mxu0 0.0
        %833 = vmatprep.subr.mxu0 0.0
        %834 = vmatpush1.msra.mxu0 0.0
        %835 = vmatprep.subr.mxu0 0.0
        %836 = vmatpush1.msra.mxu0 0.0
        %837 = vmatprep.subr.mxu0 0.0
        %838 = vmatpush1.msra.mxu0 0.0
        %839 = vmatprep.subr.mxu0 0.0
        %840 = vmatpush1.msra.mxu0 %v342
        %841 = vmatprep.subr.mxu0 0.0
        %842 = vmatpush2.msra.mxu0 0.0
        %843 = vmatprep.subr.mxu0 0.0
        %844 = vmatpush2.msra.mxu0 0.0
        %845 = vmatprep.subr.mxu0 0.0
        %846 = vmatpush2.msra.mxu0 0.0
        %847 = vmatprep.subr.mxu0 0.0
        %848 = vmatpush2.msra.mxu0 0.0
        %849 = vmatprep.subr.mxu0 0.0
        %850 = vmatpush2.msra.mxu0 0.0
        %851 = vmatprep.subr.mxu0 0.0
        %852 = vmatpush2.msra.mxu0 0.0
        %853 = vmatprep.subr.mxu0 0.0
        %854 = vmatpush2.msra.mxu0 0.0
        %855 = vmatprep.subr.mxu0 0.0
        %856 = vmatpush2.msra.mxu0 0.0
        %857 = vmatprep.subr.mxu0 0.0
        %858 = vmatpush2.msra.mxu0 0.0
        %859 = vmatprep.subr.mxu0 0.0
        %860 = vmatpush2.msra.mxu0 0.0
        %861 = vmatprep.subr.mxu0 0.0
        %862 = vmatpush2.msra.mxu0 0.0
        %863 = vmatprep.subr.mxu0 0.0
        %864 = vmatpush2.msra.mxu0 0.0
        %865 = vmatprep.subr.mxu0 0.0
        %866 = vmatpush2.msra.mxu0 0.0
        %867 = vmatprep.subr.mxu0 0.0
        %868 = vmatpush2.msra.mxu0 0.0
        %869 = vmatprep.subr.mxu0 0.0
        %870 = vmatpush2.msra.mxu0 0.0
        %871 = vmatprep.subr.mxu0 0.0
        %872 = vmatpush2.msra.mxu0 0.0
        %873 = vmatprep.mubr.f32.mxu0 0.0
        %874 = vmatmul.mubr.f32.gmra.mxu0 %v807
        %v875 = vpop.f32.mrf.mxu0
        %v876 = vadd.f32 0.0, %v875
        %v877 = vpop.f32.mrf.mxu0
        %878 = vdwg.mxu0
        %v880 = vsel %vm367, %v335, 0
        %882 = vmatprep.subr.mxu0 0.0
        %883 = vmatpush1.msra.mxu0 0.0
        %884 = vmatprep.subr.mxu0 0.0
        %885 = vmatpush1.msra.mxu0 0.0
        %886 = vmatprep.subr.mxu0 0.0
        %887 = vmatpush1.msra.mxu0 0.0
        %888 = vmatprep.subr.mxu0 0.0
        %889 = vmatpush1.msra.mxu0 0.0
        %890 = vmatprep.subr.mxu0 0.0
        %891 = vmatpush1.msra.mxu0 0.0
        %892 = vmatprep.subr.mxu0 0.0
        %893 = vmatpush1.msra.mxu0 0.0
        %894 = vmatprep.subr.mxu0 0.0
        %895 = vmatpush1.msra.mxu0 0.0
        %896 = vmatprep.subr.mxu0 0.0
        %897 = vmatpush1.msra.mxu0 0.0
        %898 = vmatprep.subr.mxu0 0.0
        %899 = vmatpush1.msra.mxu0 0.0
        %900 = vmatprep.subr.mxu0 0.0
        %901 = vmatpush1.msra.mxu0 0.0
        %902 = vmatprep.subr.mxu0 0.0
        %903 = vmatpush1.msra.mxu0 0.0
        %904 = vmatprep.subr.mxu0 0.0
        %905 = vmatpush1.msra.mxu0 0.0
        %906 = vmatprep.subr.mxu0 0.0
        %907 = vmatpush1.msra.mxu0 0.0
        %908 = vmatprep.subr.mxu0 0.0
        %909 = vmatpush1.msra.mxu0 0.0
        %910 = vmatprep.subr.mxu0 0.0
        %911 = vmatpush1.msra.mxu0 0.0
        %912 = vmatprep.subr.mxu0 0.0
        %913 = vmatpush1.msra.mxu0 %v343
        %914 = vmatprep.subr.mxu0 0.0
        %915 = vmatpush2.msra.mxu0 0.0
        %916 = vmatprep.subr.mxu0 0.0
        %917 = vmatpush2.msra.mxu0 0.0
        %918 = vmatprep.subr.mxu0 0.0
        %919 = vmatpush2.msra.mxu0 0.0
        %920 = vmatprep.subr.mxu0 0.0
        %921 = vmatpush2.msra.mxu0 0.0
        %922 = vmatprep.subr.mxu0 0.0
        %923 = vmatpush2.msra.mxu0 0.0
        %924 = vmatprep.subr.mxu0 0.0
        %925 = vmatpush2.msra.mxu0 0.0
        %926 = vmatprep.subr.mxu0 0.0
        %927 = vmatpush2.msra.mxu0 0.0
        %928 = vmatprep.subr.mxu0 0.0
        %929 = vmatpush2.msra.mxu0 0.0
        %930 = vmatprep.subr.mxu0 0.0
        %931 = vmatpush2.msra.mxu0 0.0
        %932 = vmatprep.subr.mxu0 0.0
        %933 = vmatpush2.msra.mxu0 0.0
        %934 = vmatprep.subr.mxu0 0.0
        %935 = vmatpush2.msra.mxu0 0.0
        %936 = vmatprep.subr.mxu0 0.0
        %937 = vmatpush2.msra.mxu0 0.0
        %938 = vmatprep.subr.mxu0 0.0
        %939 = vmatpush2.msra.mxu0 0.0
        %940 = vmatprep.subr.mxu0 0.0
        %941 = vmatpush2.msra.mxu0 0.0
        %942 = vmatprep.subr.mxu0 0.0
        %943 = vmatpush2.msra.mxu0 0.0
        %944 = vmatprep.subr.mxu0 0.0
        %945 = vmatpush2.msra.mxu0 0.0
        %946 = vmatprep.mubr.f32.mxu0 0.0
        %947 = vmatmul.mubr.f32.gmra.mxu0 %v880
        %v948 = vpop.f32.mrf.mxu0
        %v949 = vadd.f32 0.0, %v948
        %v950 = vpop.f32.mrf.mxu0
        %951 = vdwg.mxu0
        %v952 = vld [vmem:[%s2] sm:$0xff]
        %v953 = vld [vmem:[%s2 + $0x8] sm:$0xff]
        %v954 = vlaneseq
        %v955 = vshrl.u32 %v954, 7
        %v956 = vsub.s32 0, %v955
        %v957 = vrot.slane %v356, %v956
        %vm958 = vcmask 130048
        %v960 = vsel %vm958, %v438, 0
        %v963 = vsel %vm958, %v511, 0
        %v966 = vsel %vm958, %v584, 0
        %v969 = vsel %vm958, %v657, 0
        %v972 = vsel %vm958, %v730, 0
        %v975 = vsel %vm958, %v803, 0
        %v978 = vsel %vm958, %v876, 0
        %v981 = vsel %vm958, %v949, 0
        %983 = vmatprep.subr.mxu0 0.0
        %984 = vmatpush1.msra.mxu0 0.0
        %985 = vmatprep.subr.mxu0 0.0
        %986 = vmatpush1.msra.mxu0 0.0
        %987 = vmatprep.subr.mxu0 0.0
        %988 = vmatpush1.msra.mxu0 0.0
        %989 = vmatprep.subr.mxu0 0.0
        %990 = vmatpush1.msra.mxu0 0.0
        %991 = vmatprep.subr.mxu0 0.0
        %992 = vmatpush1.msra.mxu0 0.0
        %993 = vmatprep.subr.mxu0 0.0
        %994 = vmatpush1.msra.mxu0 0.0
        %995 = vmatprep.subr.mxu0 0.0
        %996 = vmatpush1.msra.mxu0 0.0
        %997 = vmatprep.subr.mxu0 0.0
        %998 = vmatpush1.msra.mxu0 0.0
        %999 = vmatprep.subr.mxu0 0.0
        %1000 = vmatpush1.msra.mxu0 0.0
        %1001 = vmatprep.subr.mxu0 0.0
        %1002 = vmatpush1.msra.mxu0 0.0
        %1003 = vmatprep.subr.mxu0 0.0
        %1004 = vmatpush1.msra.mxu0 0.0
        %1005 = vmatprep.subr.mxu0 0.0
        %1006 = vmatpush1.msra.mxu0 0.0
        %1007 = vmatprep.subr.mxu0 0.0
        %1008 = vmatpush1.msra.mxu0 0.0
        %1009 = vmatprep.subr.mxu0 0.0
        %1010 = vmatpush1.msra.mxu0 0.0
        %1011 = vmatprep.subr.mxu0 0.0
        %1012 = vmatpush1.msra.mxu0 %v953
        %1013 = vmatprep.subr.mxu0 0.0
        %1014 = vmatpush1.msra.mxu0 %v952
        %1015 = vmatprep.subr.mxu0 0.0
        %1016 = vmatpush2.msra.mxu0 0.0
        %1017 = vmatprep.subr.mxu0 0.0
        %1018 = vmatpush2.msra.mxu0 0.0
        %1019 = vmatprep.subr.mxu0 0.0
        %1020 = vmatpush2.msra.mxu0 0.0
        %1021 = vmatprep.subr.mxu0 0.0
        %1022 = vmatpush2.msra.mxu0 0.0
        %1023 = vmatprep.subr.mxu0 0.0
        %1024 = vmatpush2.msra.mxu0 0.0
        %1025 = vmatprep.subr.mxu0 0.0
        %1026 = vmatpush2.msra.mxu0 0.0
        %1027 = vmatprep.subr.mxu0 0.0
        %1028 = vmatpush2.msra.mxu0 0.0
        %1029 = vmatprep.subr.mxu0 0.0
        %1030 = vmatpush2.msra.mxu0 0.0
        %1031 = vmatprep.subr.mxu0 0.0
        %1032 = vmatpush2.msra.mxu0 0.0
        %1033 = vmatprep.subr.mxu0 0.0
        %1034 = vmatpush2.msra.mxu0 0.0
        %1035 = vmatprep.subr.mxu0 0.0
        %1036 = vmatpush2.msra.mxu0 0.0
        %1037 = vmatprep.subr.mxu0 0.0
        %1038 = vmatpush2.msra.mxu0 0.0
        %1039 = vmatprep.subr.mxu0 0.0
        %1040 = vmatpush2.msra.mxu0 0.0
        %1041 = vmatprep.subr.mxu0 0.0
        %1042 = vmatpush2.msra.mxu0 0.0
        %1043 = vmatprep.subr.mxu0 0.0
        %1044 = vmatpush2.msra.mxu0 0.0
        %1045 = vmatprep.subr.mxu0 0.0
        %1046 = vmatpush2.msra.mxu0 0.0
        %1047 = vmatprep.mubr.f32.mxu0 0.0
        %1048 = vmatmul.mubr.f32.gmra.mxu0 %v960
        %v1049 = vpop.f32.mrf.mxu0
        %v1050 = vadd.f32 %v957, %v1049
        %v1051 = vpop.f32.mrf.mxu0
        %1052 = vmatprep.mubr.f32.mxu0 0.0
        %1053 = vmatmul.mubr.f32.gmra.mxu0 %v963
        %v1054 = vpop.f32.mrf.mxu0
        %v1055 = vadd.f32 %v957, %v1054
        %v1056 = vpop.f32.mrf.mxu0
        %1057 = vmatprep.mubr.f32.mxu0 0.0
        %1058 = vmatmul.mubr.f32.gmra.mxu0 %v966
        %v1059 = vpop.f32.mrf.mxu0
        %v1060 = vadd.f32 %v957, %v1059
        %v1061 = vpop.f32.mrf.mxu0
        %1062 = vmatprep.mubr.f32.mxu0 0.0
        %1063 = vmatmul.mubr.f32.gmra.mxu0 %v969
        %v1064 = vpop.f32.mrf.mxu0
        %v1065 = vadd.f32 %v957, %v1064
        %v1066 = vpop.f32.mrf.mxu0
        %1067 = vmatprep.mubr.f32.mxu0 0.0
        %1068 = vmatmul.mubr.f32.gmra.mxu0 %v972
        %v1069 = vpop.f32.mrf.mxu0
        %v1070 = vadd.f32 %v957, %v1069
        %v1071 = vpop.f32.mrf.mxu0
        %1072 = vmatprep.mubr.f32.mxu0 0.0
        %1073 = vmatmul.mubr.f32.gmra.mxu0 %v975
        %v1074 = vpop.f32.mrf.mxu0
        %v1075 = vadd.f32 %v957, %v1074
        %v1076 = vpop.f32.mrf.mxu0
        %1077 = vmatprep.mubr.f32.mxu0 0.0
        %1078 = vmatmul.mubr.f32.gmra.mxu0 %v978
        %v1079 = vpop.f32.mrf.mxu0
        %v1080 = vadd.f32 %v957, %v1079
        %v1081 = vpop.f32.mrf.mxu0
        %1082 = vmatprep.mubr.f32.mxu0 0.0
        %1083 = vmatmul.mubr.f32.gmra.mxu0 %v981
        %v1084 = vpop.f32.mrf.mxu0
        %v1085 = vadd.f32 %v957, %v1084
        %v1086 = vpop.f32.mrf.mxu0
        %1087 = vdwg.mxu0
        %v1088 = vmax.f32 %v1050, 0.0
        %v1089 = vmax.f32 %v1055, 0.0
        %v1090 = vmax.f32 %v1060, 0.0
        %v1091 = vmax.f32 %v1065, 0.0
        %v1092 = vmax.f32 %v1070, 0.0
        %v1093 = vmax.f32 %v1075, 0.0
        %v1094 = vmax.f32 %v1080, 0.0
        %v1095 = vmax.f32 %v1085, 0.0
        %v1096 = vlaneseq
        %v1097 = vshrl.u32 %v1096, 7
        %v1098 = vsub.s32 1, %v1097
        %v1099 = vrot.slane %v356, %v1098
        %vm1100 = vcmask 261120
        %v1102 = vsel %vm1100, %v1088, 0
        %v1105 = vsel %vm1100, %v1089, 0
        %v1108 = vsel %vm1100, %v1090, 0
        %v1111 = vsel %vm1100, %v1091, 0
        %v1114 = vsel %vm1100, %v1092, 0
        %v1117 = vsel %vm1100, %v1093, 0
        %v1120 = vsel %vm1100, %v1094, 0
        %v1123 = vsel %vm1100, %v1095, 0
        %1125 = vmatprep.subr.mxu0 0.0
        %1126 = vmatpush1.msra.mxu0 0.0
        %1127 = vmatprep.subr.mxu0 0.0
        %1128 = vmatpush1.msra.mxu0 0.0
        %1129 = vmatprep.subr.mxu0 0.0
        %1130 = vmatpush1.msra.mxu0 0.0
        %1131 = vmatprep.subr.mxu0 0.0
        %1132 = vmatpush1.msra.mxu0 0.0
        %1133 = vmatprep.subr.mxu0 0.0
        %1134 = vmatpush1.msra.mxu0 0.0
        %1135 = vmatprep.subr.mxu0 0.0
        %1136 = vmatpush1.msra.mxu0 0.0
        %1137 = vmatprep.subr.mxu0 0.0
        %1138 = vmatpush1.msra.mxu0 0.0
        %1139 = vmatprep.subr.mxu0 0.0
        %1140 = vmatpush1.msra.mxu0 0.0
        %1141 = vmatprep.subr.mxu0 0.0
        %1142 = vmatpush1.msra.mxu0 0.0
        %1143 = vmatprep.subr.mxu0 0.0
        %1144 = vmatpush1.msra.mxu0 0.0
        %1145 = vmatprep.subr.mxu0 0.0
        %1146 = vmatpush1.msra.mxu0 0.0
        %1147 = vmatprep.subr.mxu0 0.0
        %1148 = vmatpush1.msra.mxu0 0.0
        %1149 = vmatprep.subr.mxu0 0.0
        %1150 = vmatpush1.msra.mxu0 %v347
        %1151 = vmatprep.subr.mxu0 0.0
        %1152 = vmatpush1.msra.mxu0 %v346
        %1153 = vmatprep.subr.mxu0 0.0
        %1154 = vmatpush1.msra.mxu0 %v345
        %1155 = vmatprep.subr.mxu0 0.0
        %1156 = vmatpush1.msra.mxu0 %v344
        %1157 = vmatprep.subr.mxu0 0.0
        %1158 = vmatpush2.msra.mxu0 0.0
        %1159 = vmatprep.subr.mxu0 0.0
        %1160 = vmatpush2.msra.mxu0 0.0
        %1161 = vmatprep.subr.mxu0 0.0
        %1162 = vmatpush2.msra.mxu0 0.0
        %1163 = vmatprep.subr.mxu0 0.0
        %1164 = vmatpush2.msra.mxu0 0.0
        %1165 = vmatprep.subr.mxu0 0.0
        %1166 = vmatpush2.msra.mxu0 0.0
        %1167 = vmatprep.subr.mxu0 0.0
        %1168 = vmatpush2.msra.mxu0 0.0
        %1169 = vmatprep.subr.mxu0 0.0
        %1170 = vmatpush2.msra.mxu0 0.0
        %1171 = vmatprep.subr.mxu0 0.0
        %1172 = vmatpush2.msra.mxu0 0.0
        %1173 = vmatprep.subr.mxu0 0.0
        %1174 = vmatpush2.msra.mxu0 0.0
        %1175 = vmatprep.subr.mxu0 0.0
        %1176 = vmatpush2.msra.mxu0 0.0
        %1177 = vmatprep.subr.mxu0 0.0
        %1178 = vmatpush2.msra.mxu0 0.0
        %1179 = vmatprep.subr.mxu0 0.0
        %1180 = vmatpush2.msra.mxu0 0.0
        %1181 = vmatprep.subr.mxu0 0.0
        %1182 = vmatpush2.msra.mxu0 0.0
        %1183 = vmatprep.subr.mxu0 0.0
        %1184 = vmatpush2.msra.mxu0 0.0
        %1185 = vmatprep.subr.mxu0 0.0
        %1186 = vmatpush2.msra.mxu0 0.0
        %1187 = vmatprep.subr.mxu0 0.0
        %1188 = vmatpush2.msra.mxu0 0.0
        %1189 = vmatprep.mubr.f32.mxu0 0.0
        %1190 = vmatmul.mubr.f32.gmra.mxu0 %v1102
        %v1191 = vpop.f32.mrf.mxu0
        %v1192 = vadd.f32 %v1099, %v1191
        %v1193 = vpop.f32.mrf.mxu0
        %1194 = vmatprep.mubr.f32.mxu0 0.0
        %1195 = vmatmul.mubr.f32.gmra.mxu0 %v1105
        %v1196 = vpop.f32.mrf.mxu0
        %v1197 = vadd.f32 %v1099, %v1196
        %v1198 = vpop.f32.mrf.mxu0
        %1199 = vmatprep.mubr.f32.mxu0 0.0
        %1200 = vmatmul.mubr.f32.gmra.mxu0 %v1108
        %v1201 = vpop.f32.mrf.mxu0
        %v1202 = vadd.f32 %v1099, %v1201
        %v1203 = vpop.f32.mrf.mxu0
        %1204 = vmatprep.mubr.f32.mxu0 0.0
        %1205 = vmatmul.mubr.f32.gmra.mxu0 %v1111
        %v1206 = vpop.f32.mrf.mxu0
        %v1207 = vadd.f32 %v1099, %v1206
        %v1208 = vpop.f32.mrf.mxu0
        %1209 = vmatprep.mubr.f32.mxu0 0.0
        %1210 = vmatmul.mubr.f32.gmra.mxu0 %v1114
        %v1211 = vpop.f32.mrf.mxu0
        %v1212 = vadd.f32 %v1099, %v1211
        %v1213 = vpop.f32.mrf.mxu0
        %1214 = vmatprep.mubr.f32.mxu0 0.0
        %1215 = vmatmul.mubr.f32.gmra.mxu0 %v1117
        %v1216 = vpop.f32.mrf.mxu0
        %v1217 = vadd.f32 %v1099, %v1216
        %v1218 = vpop.f32.mrf.mxu0
        %1219 = vmatprep.mubr.f32.mxu0 0.0
        %1220 = vmatmul.mubr.f32.gmra.mxu0 %v1120
        %v1221 = vpop.f32.mrf.mxu0
        %v1222 = vadd.f32 %v1099, %v1221
        %v1223 = vpop.f32.mrf.mxu0
        %1224 = vmatprep.mubr.f32.mxu0 0.0
        %1225 = vmatmul.mubr.f32.gmra.mxu0 %v1123
        %v1226 = vpop.f32.mrf.mxu0
        %v1227 = vadd.f32 %v1099, %v1226
        %v1228 = vpop.f32.mrf.mxu0
        %1229 = vdwg.mxu0
        %v1230 = vmax.f32 %v1192, 0.0
        %v1231 = vmax.f32 %v1197, 0.0
        %v1232 = vmax.f32 %v1202, 0.0
        %v1233 = vmax.f32 %v1207, 0.0
        %v1234 = vmax.f32 %v1212, 0.0
        %v1235 = vmax.f32 %v1217, 0.0
        %v1236 = vmax.f32 %v1222, 0.0
        %v1237 = vmax.f32 %v1227, 0.0
        %v1238 = vsel %vm1100, %v1230, 0.0
        %v1239 = vrot.slane %v1238, 4
        %v1240 = vadd.f32 %v1238, %v1239
        %v1241 = vrot.slane %v1240, 2
        %v1242 = vadd.f32 %v1240, %v1241
        %v1243 = vrot.slane %v1242, 1
        %v1244 = vadd.f32 %v1242, %v1243
        %v1245 = vsel %vm1100, %v1231, 0.0
        %v1246 = vrot.slane %v1245, 4
        %v1247 = vadd.f32 %v1245, %v1246
        %v1248 = vrot.slane %v1247, 2
        %v1249 = vadd.f32 %v1247, %v1248
        %v1250 = vrot.slane %v1249, 1
        %v1251 = vadd.f32 %v1249, %v1250
        %v1252 = vsel %vm1100, %v1232, 0.0
        %v1253 = vrot.slane %v1252, 4
        %v1254 = vadd.f32 %v1252, %v1253
        %v1255 = vrot.slane %v1254, 2
        %v1256 = vadd.f32 %v1254, %v1255
        %v1257 = vrot.slane %v1256, 1
        %v1258 = vadd.f32 %v1256, %v1257
        %v1259 = vsel %vm1100, %v1233, 0.0
        %v1260 = vrot.slane %v1259, 4
        %v1261 = vadd.f32 %v1259, %v1260
        %v1262 = vrot.slane %v1261, 2
        %v1263 = vadd.f32 %v1261, %v1262
        %v1264 = vrot.slane %v1263, 1
        %v1265 = vadd.f32 %v1263, %v1264
        %v1266 = vsel %vm1100, %v1234, 0.0
        %v1267 = vrot.slane %v1266, 4
        %v1268 = vadd.f32 %v1266, %v1267
        %v1269 = vrot.slane %v1268, 2
        %v1270 = vadd.f32 %v1268, %v1269
        %v1271 = vrot.slane %v1270, 1
        %v1272 = vadd.f32 %v1270, %v1271
        %v1273 = vsel %vm1100, %v1235, 0.0
        %v1274 = vrot.slane %v1273, 4
        %v1275 = vadd.f32 %v1273, %v1274
        %v1276 = vrot.slane %v1275, 2
        %v1277 = vadd.f32 %v1275, %v1276
        %v1278 = vrot.slane %v1277, 1
        %v1279 = vadd.f32 %v1277, %v1278
        %v1280 = vsel %vm1100, %v1236, 0.0
        %v1281 = vrot.slane %v1280, 4
        %v1282 = vadd.f32 %v1280, %v1281
        %v1283 = vrot.slane %v1282, 2
        %v1284 = vadd.f32 %v1282, %v1283
        %v1285 = vrot.slane %v1284, 1
        %v1286 = vadd.f32 %v1284, %v1285
        %v1287 = vsel %vm1100, %v1237, 0.0
        %v1288 = vrot.slane %v1287, 4
        %v1289 = vadd.f32 %v1287, %v1288
        %v1290 = vrot.slane %v1289, 2
        %v1291 = vadd.f32 %v1289, %v1290
        %v1292 = vrot.slane %v1291, 1
        %v1293 = vadd.f32 %v1291, %v1292
        %1294 = vmatprep.subr.mxu0 0.0
        %1295 = vmatpush1.msra.mxu0 0.0
        %1296 = vmatprep.subr.mxu0 0.0
        %1297 = vmatpush1.msra.mxu0 0.0
        %1298 = vmatprep.subr.mxu0 0.0
        %1299 = vmatpush1.msra.mxu0 0.0
        %1300 = vmatprep.subr.mxu0 0.0
        %1301 = vmatpush1.msra.mxu0 0.0
        %1302 = vmatprep.subr.mxu0 0.0
        %1303 = vmatpush1.msra.mxu0 0.0
        %1304 = vmatprep.subr.mxu0 0.0
        %1305 = vmatpush1.msra.mxu0 0.0
        %1306 = vmatprep.subr.mxu0 0.0
        %1307 = vmatpush1.msra.mxu0 0.0
        %1308 = vmatprep.subr.mxu0 0.0
        %1309 = vmatpush1.msra.mxu0 0.0
        %1310 = vmatprep.subr.mxu0 0.0
        %1311 = vmatpush1.msra.mxu0 0.0
        %1312 = vmatprep.subr.mxu0 0.0
        %1313 = vmatpush1.msra.mxu0 0.0
        %1314 = vmatprep.subr.mxu0 0.0
        %1315 = vmatpush1.msra.mxu0 0.0
        %1316 = vmatprep.subr.mxu0 0.0
        %1317 = vmatpush1.msra.mxu0 0.0
        %1318 = vmatprep.subr.mxu0 0.0
        %1319 = vmatpush1.msra.mxu0 0.0
        %1320 = vmatprep.subr.mxu0 0.0
        %1321 = vmatpush1.msra.mxu0 0.0
        %1322 = vmatprep.subr.mxu0 0.0
        %1323 = vmatpush1.msra.mxu0 0.0
        %1324 = vmatprep.subr.mxu0 0.0
        %1325 = vmatpush1.msra.mxu0 %v1230
        %1326 = vmatprep.subr.mxu0 0.0
        %1327 = vmatpush2.msra.mxu0 0.0
        %1328 = vmatprep.subr.mxu0 0.0
        %1329 = vmatpush2.msra.mxu0 0.0
        %1330 = vmatprep.subr.mxu0 0.0
        %1331 = vmatpush2.msra.mxu0 0.0
        %1332 = vmatprep.subr.mxu0 0.0
        %1333 = vmatpush2.msra.mxu0 0.0
        %1334 = vmatprep.subr.mxu0 0.0
        %1335 = vmatpush2.msra.mxu0 0.0
        %1336 = vmatprep.subr.mxu0 0.0
        %1337 = vmatpush2.msra.mxu0 0.0
        %1338 = vmatprep.subr.mxu0 0.0
        %1339 = vmatpush2.msra.mxu0 0.0
        %1340 = vmatprep.subr.mxu0 0.0
        %1341 = vmatpush2.msra.mxu0 0.0
        %1342 = vmatprep.subr.mxu0 0.0
        %1343 = vmatpush2.msra.mxu0 0.0
        %1344 = vmatprep.subr.mxu0 0.0
        %1345 = vmatpush2.msra.mxu0 0.0
        %1346 = vmatprep.subr.mxu0 0.0
        %1347 = vmatpush2.msra.mxu0 0.0
        %1348 = vmatprep.subr.mxu0 0.0
        %1349 = vmatpush2.msra.mxu0 0.0
        %1350 = vmatprep.subr.mxu0 0.0
        %1351 = vmatpush2.msra.mxu0 0.0
        %1352 = vmatprep.subr.mxu0 0.0
        %1353 = vmatpush2.msra.mxu0 0.0
        %1354 = vmatprep.subr.mxu0 0.0
        %1355 = vmatpush2.msra.mxu0 0.0
        %1356 = vmatprep.subr.mxu0 0.0
        %1357 = vmatpush2.msra.mxu0 0.0
        %1358 = vmatprep.mubr.f32.mxu0 0.0
        %1359 = vmatmul.mubr.f32.gmra.mxu0 %v369
        %v1360 = vpop.f32.mrf.mxu0
        %v1361 = vadd.f32 0.0, %v1360
        %v1362 = vpop.f32.mrf.mxu0
        %1363 = vdwg.mxu0
        %1364 = vmatprep.subr.mxu0 0.0
        %1365 = vmatpush1.msra.mxu0 0.0
        %1366 = vmatprep.subr.mxu0 0.0
        %1367 = vmatpush1.msra.mxu0 0.0
        %1368 = vmatprep.subr.mxu0 0.0
        %1369 = vmatpush1.msra.mxu0 0.0
        %1370 = vmatprep.subr.mxu0 0.0
        %1371 = vmatpush1.msra.mxu0 0.0
        %1372 = vmatprep.subr.mxu0 0.0
        %1373 = vmatpush1.msra.mxu0 0.0
        %1374 = vmatprep.subr.mxu0 0.0
        %1375 = vmatpush1.msra.mxu0 0.0
        %1376 = vmatprep.subr.mxu0 0.0
        %1377 = vmatpush1.msra.mxu0 0.0
        %1378 = vmatprep.subr.mxu0 0.0
        %1379 = vmatpush1.msra.mxu0 0.0
        %1380 = vmatprep.subr.mxu0 0.0
        %1381 = vmatpush1.msra.mxu0 0.0
        %1382 = vmatprep.subr.mxu0 0.0
        %1383 = vmatpush1.msra.mxu0 0.0
        %1384 = vmatprep.subr.mxu0 0.0
        %1385 = vmatpush1.msra.mxu0 0.0
        %1386 = vmatprep.subr.mxu0 0.0
        %1387 = vmatpush1.msra.mxu0 0.0
        %1388 = vmatprep.subr.mxu0 0.0
        %1389 = vmatpush1.msra.mxu0 0.0
        %1390 = vmatprep.subr.mxu0 0.0
        %1391 = vmatpush1.msra.mxu0 0.0
        %1392 = vmatprep.subr.mxu0 0.0
        %1393 = vmatpush1.msra.mxu0 0.0
        %1394 = vmatprep.subr.mxu0 0.0
        %1395 = vmatpush1.msra.mxu0 %v1231
        %1396 = vmatprep.subr.mxu0 0.0
        %1397 = vmatpush2.msra.mxu0 0.0
        %1398 = vmatprep.subr.mxu0 0.0
        %1399 = vmatpush2.msra.mxu0 0.0
        %1400 = vmatprep.subr.mxu0 0.0
        %1401 = vmatpush2.msra.mxu0 0.0
        %1402 = vmatprep.subr.mxu0 0.0
        %1403 = vmatpush2.msra.mxu0 0.0
        %1404 = vmatprep.subr.mxu0 0.0
        %1405 = vmatpush2.msra.mxu0 0.0
        %1406 = vmatprep.subr.mxu0 0.0
        %1407 = vmatpush2.msra.mxu0 0.0
        %1408 = vmatprep.subr.mxu0 0.0
        %1409 = vmatpush2.msra.mxu0 0.0
        %1410 = vmatprep.subr.mxu0 0.0
        %1411 = vmatpush2.msra.mxu0 0.0
        %1412 = vmatprep.subr.mxu0 0.0
        %1413 = vmatpush2.msra.mxu0 0.0
        %1414 = vmatprep.subr.mxu0 0.0
        %1415 = vmatpush2.msra.mxu0 0.0
        %1416 = vmatprep.subr.mxu0 0.0
        %1417 = vmatpush2.msra.mxu0 0.0
        %1418 = vmatprep.subr.mxu0 0.0
        %1419 = vmatpush2.msra.mxu0 0.0
        %1420 = vmatprep.subr.mxu0 0.0
        %1421 = vmatpush2.msra.mxu0 0.0
        %1422 = vmatprep.subr.mxu0 0.0
        %1423 = vmatpush2.msra.mxu0 0.0
        %1424 = vmatprep.subr.mxu0 0.0
        %1425 = vmatpush2.msra.mxu0 0.0
        %1426 = vmatprep.subr.mxu0 0.0
        %1427 = vmatpush2.msra.mxu0 0.0
        %1428 = vmatprep.mubr.f32.mxu0 0.0
        %1429 = vmatmul.mubr.f32.gmra.mxu0 %v442
        %v1430 = vpop.f32.mrf.mxu0
        %v1431 = vadd.f32 0.0, %v1430
        %v1432 = vpop.f32.mrf.mxu0
        %1433 = vdwg.mxu0
        %1434 = vmatprep.subr.mxu0 0.0
        %1435 = vmatpush1.msra.mxu0 0.0
        %1436 = vmatprep.subr.mxu0 0.0
        %1437 = vmatpush1.msra.mxu0 0.0
        %1438 = vmatprep.subr.mxu0 0.0
        %1439 = vmatpush1.msra.mxu0 0.0
        %1440 = vmatprep.subr.mxu0 0.0
        %1441 = vmatpush1.msra.mxu0 0.0
        %1442 = vmatprep.subr.mxu0 0.0
        %1443 = vmatpush1.msra.mxu0 0.0
        %1444 = vmatprep.subr.mxu0 0.0
        %1445 = vmatpush1.msra.mxu0 0.0
        %1446 = vmatprep.subr.mxu0 0.0
        %1447 = vmatpush1.msra.mxu0 0.0
        %1448 = vmatprep.subr.mxu0 0.0
        %1449 = vmatpush1.msra.mxu0 0.0
        %1450 = vmatprep.subr.mxu0 0.0
        %1451 = vmatpush1.msra.mxu0 0.0
        %1452 = vmatprep.subr.mxu0 0.0
        %1453 = vmatpush1.msra.mxu0 0.0
        %1454 = vmatprep.subr.mxu0 0.0
        %1455 = vmatpush1.msra.mxu0 0.0
        %1456 = vmatprep.subr.mxu0 0.0
        %1457 = vmatpush1.msra.mxu0 0.0
        %1458 = vmatprep.subr.mxu0 0.0
        %1459 = vmatpush1.msra.mxu0 0.0
        %1460 = vmatprep.subr.mxu0 0.0
        %1461 = vmatpush1.msra.mxu0 0.0
        %1462 = vmatprep.subr.mxu0 0.0
        %1463 = vmatpush1.msra.mxu0 0.0
        %1464 = vmatprep.subr.mxu0 0.0
        %1465 = vmatpush1.msra.mxu0 %v1232
        %1466 = vmatprep.subr.mxu0 0.0
        %1467 = vmatpush2.msra.mxu0 0.0
        %1468 = vmatprep.subr.mxu0 0.0
        %1469 = vmatpush2.msra.mxu0 0.0
        %1470 = vmatprep.subr.mxu0 0.0
        %1471 = vmatpush2.msra.mxu0 0.0
        %1472 = vmatprep.subr.mxu0 0.0
        %1473 = vmatpush2.msra.mxu0 0.0
        %1474 = vmatprep.subr.mxu0 0.0
        %1475 = vmatpush2.msra.mxu0 0.0
        %1476 = vmatprep.subr.mxu0 0.0
        %1477 = vmatpush2.msra.mxu0 0.0
        %1478 = vmatprep.subr.mxu0 0.0
        %1479 = vmatpush2.msra.mxu0 0.0
        %1480 = vmatprep.subr.mxu0 0.0
        %1481 = vmatpush2.msra.mxu0 0.0
        %1482 = vmatprep.subr.mxu0 0.0
        %1483 = vmatpush2.msra.mxu0 0.0
        %1484 = vmatprep.subr.mxu0 0.0
        %1485 = vmatpush2.msra.mxu0 0.0
        %1486 = vmatprep.subr.mxu0 0.0
        %1487 = vmatpush2.msra.mxu0 0.0
        %1488 = vmatprep.subr.mxu0 0.0
        %1489 = vmatpush2.msra.mxu0 0.0
        %1490 = vmatprep.subr.mxu0 0.0
        %1491 = vmatpush2.msra.mxu0 0.0
        %1492 = vmatprep.subr.mxu0 0.0
        %1493 = vmatpush2.msra.mxu0 0.0
        %1494 = vmatprep.subr.mxu0 0.0
        %1495 = vmatpush2.msra.mxu0 0.0
        %1496 = vmatprep.subr.mxu0 0.0
        %1497 = vmatpush2.msra.mxu0 0.0
        %1498 = vmatprep.mubr.f32.mxu0 0.0
        %1499 = vmatmul.mubr.f32.gmra.mxu0 %v515
        %v1500 = vpop.f32.mrf.mxu0
        %v1501 = vadd.f32 0.0, %v1500
        %v1502 = vpop.f32.mrf.mxu0
        %1503 = vdwg.mxu0
        %1504 = vmatprep.subr.mxu0 0.0
        %1505 = vmatpush1.msra.mxu0 0.0
        %1506 = vmatprep.subr.mxu0 0.0
        %1507 = vmatpush1.msra.mxu0 0.0
        %1508 = vmatprep.subr.mxu0 0.0
        %1509 = vmatpush1.msra.mxu0 0.0
        %1510 = vmatprep.subr.mxu0 0.0
        %1511 = vmatpush1.msra.mxu0 0.0
        %1512 = vmatprep.subr.mxu0 0.0
        %1513 = vmatpush1.msra.mxu0 0.0
        %1514 = vmatprep.subr.mxu0 0.0
        %1515 = vmatpush1.msra.mxu0 0.0
        %1516 = vmatprep.subr.mxu0 0.0
        %1517 = vmatpush1.msra.mxu0 0.0
        %1518 = vmatprep.subr.mxu0 0.0
        %1519 = vmatpush1.msra.mxu0 0.0
        %1520 = vmatprep.subr.mxu0 0.0
        %1521 = vmatpush1.msra.mxu0 0.0
        %1522 = vmatprep.subr.mxu0 0.0
        %1523 = vmatpush1.msra.mxu0 0.0
        %1524 = vmatprep.subr.mxu0 0.0
        %1525 = vmatpush1.msra.mxu0 0.0
        %1526 = vmatprep.subr.mxu0 0.0
        %1527 = vmatpush1.msra.mxu0 0.0
        %1528 = vmatprep.subr.mxu0 0.0
        %1529 = vmatpush1.msra.mxu0 0.0
        %1530 = vmatprep.subr.mxu0 0.0
        %1531 = vmatpush1.msra.mxu0 0.0
        %1532 = vmatprep.subr.mxu0 0.0
        %1533 = vmatpush1.msra.mxu0 0.0
        %1534 = vmatprep.subr.mxu0 0.0
        %1535 = vmatpush1.msra.mxu0 %v1233
        %1536 = vmatprep.subr.mxu0 0.0
        %1537 = vmatpush2.msra.mxu0 0.0
        %1538 = vmatprep.subr.mxu0 0.0
        %1539 = vmatpush2.msra.mxu0 0.0
        %1540 = vmatprep.subr.mxu0 0.0
        %1541 = vmatpush2.msra.mxu0 0.0
        %1542 = vmatprep.subr.mxu0 0.0
        %1543 = vmatpush2.msra.mxu0 0.0
        %1544 = vmatprep.subr.mxu0 0.0
        %1545 = vmatpush2.msra.mxu0 0.0
        %1546 = vmatprep.subr.mxu0 0.0
        %1547 = vmatpush2.msra.mxu0 0.0
        %1548 = vmatprep.subr.mxu0 0.0
        %1549 = vmatpush2.msra.mxu0 0.0
        %1550 = vmatprep.subr.mxu0 0.0
        %1551 = vmatpush2.msra.mxu0 0.0
        %1552 = vmatprep.subr.mxu0 0.0
        %1553 = vmatpush2.msra.mxu0 0.0
        %1554 = vmatprep.subr.mxu0 0.0
        %1555 = vmatpush2.msra.mxu0 0.0
        %1556 = vmatprep.subr.mxu0 0.0
        %1557 = vmatpush2.msra.mxu0 0.0
        %1558 = vmatprep.subr.mxu0 0.0
        %1559 = vmatpush2.msra.mxu0 0.0
        %1560 = vmatprep.subr.mxu0 0.0
        %1561 = vmatpush2.msra.mxu0 0.0
        %1562 = vmatprep.subr.mxu0 0.0
        %1563 = vmatpush2.msra.mxu0 0.0
        %1564 = vmatprep.subr.mxu0 0.0
        %1565 = vmatpush2.msra.mxu0 0.0
        %1566 = vmatprep.subr.mxu0 0.0
        %1567 = vmatpush2.msra.mxu0 0.0
        %1568 = vmatprep.mubr.f32.mxu0 0.0
        %1569 = vmatmul.mubr.f32.gmra.mxu0 %v588
        %v1570 = vpop.f32.mrf.mxu0
        %v1571 = vadd.f32 0.0, %v1570
        %v1572 = vpop.f32.mrf.mxu0
        %1573 = vdwg.mxu0
        %1574 = vmatprep.subr.mxu0 0.0
        %1575 = vmatpush1.msra.mxu0 0.0
        %1576 = vmatprep.subr.mxu0 0.0
        %1577 = vmatpush1.msra.mxu0 0.0
        %1578 = vmatprep.subr.mxu0 0.0
        %1579 = vmatpush1.msra.mxu0 0.0
        %1580 = vmatprep.subr.mxu0 0.0
        %1581 = vmatpush1.msra.mxu0 0.0
        %1582 = vmatprep.subr.mxu0 0.0
        %1583 = vmatpush1.msra.mxu0 0.0
        %1584 = vmatprep.subr.mxu0 0.0
        %1585 = vmatpush1.msra.mxu0 0.0
        %1586 = vmatprep.subr.mxu0 0.0
        %1587 = vmatpush1.msra.mxu0 0.0
        %1588 = vmatprep.subr.mxu0 0.0
        %1589 = vmatpush1.msra.mxu0 0.0
        %1590 = vmatprep.subr.mxu0 0.0
        %1591 = vmatpush1.msra.mxu0 0.0
        %1592 = vmatprep.subr.mxu0 0.0
        %1593 = vmatpush1.msra.mxu0 0.0
        %1594 = vmatprep.subr.mxu0 0.0
        %1595 = vmatpush1.msra.mxu0 0.0
        %1596 = vmatprep.subr.mxu0 0.0
        %1597 = vmatpush1.msra.mxu0 0.0
        %1598 = vmatprep.subr.mxu0 0.0
        %1599 = vmatpush1.msra.mxu0 0.0
        %1600 = vmatprep.subr.mxu0 0.0
        %1601 = vmatpush1.msra.mxu0 0.0
        %1602 = vmatprep.subr.mxu0 0.0
        %1603 = vmatpush1.msra.mxu0 0.0
        %1604 = vmatprep.subr.mxu0 0.0
        %1605 = vmatpush1.msra.mxu0 %v1234
        %1606 = vmatprep.subr.mxu0 0.0
        %1607 = vmatpush2.msra.mxu0 0.0
        %1608 = vmatprep.subr.mxu0 0.0
        %1609 = vmatpush2.msra.mxu0 0.0
        %1610 = vmatprep.subr.mxu0 0.0
        %1611 = vmatpush2.msra.mxu0 0.0
        %1612 = vmatprep.subr.mxu0 0.0
        %1613 = vmatpush2.msra.mxu0 0.0
        %1614 = vmatprep.subr.mxu0 0.0
        %1615 = vmatpush2.msra.mxu0 0.0
        %1616 = vmatprep.subr.mxu0 0.0
        %1617 = vmatpush2.msra.mxu0 0.0
        %1618 = vmatprep.subr.mxu0 0.0
        %1619 = vmatpush2.msra.mxu0 0.0
        %1620 = vmatprep.subr.mxu0 0.0
        %1621 = vmatpush2.msra.mxu0 0.0
        %1622 = vmatprep.subr.mxu0 0.0
        %1623 = vmatpush2.msra.mxu0 0.0
        %1624 = vmatprep.subr.mxu0 0.0
        %1625 = vmatpush2.msra.mxu0 0.0
        %1626 = vmatprep.subr.mxu0 0.0
        %1627 = vmatpush2.msra.mxu0 0.0
        %1628 = vmatprep.subr.mxu0 0.0
        %1629 = vmatpush2.msra.mxu0 0.0
        %1630 = vmatprep.subr.mxu0 0.0
        %1631 = vmatpush2.msra.mxu0 0.0
        %1632 = vmatprep.subr.mxu0 0.0
        %1633 = vmatpush2.msra.mxu0 0.0
        %1634 = vmatprep.subr.mxu0 0.0
        %1635 = vmatpush2.msra.mxu0 0.0
        %1636 = vmatprep.subr.mxu0 0.0
        %1637 = vmatpush2.msra.mxu0 0.0
        %1638 = vmatprep.mubr.f32.mxu0 0.0
        %1639 = vmatmul.mubr.f32.gmra.mxu0 %v661
        %v1640 = vpop.f32.mrf.mxu0
        %v1641 = vadd.f32 0.0, %v1640
        %v1642 = vpop.f32.mrf.mxu0
        %1643 = vdwg.mxu0
        %1644 = vmatprep.subr.mxu0 0.0
        %1645 = vmatpush1.msra.mxu0 0.0
        %1646 = vmatprep.subr.mxu0 0.0
        %1647 = vmatpush1.msra.mxu0 0.0
        %1648 = vmatprep.subr.mxu0 0.0
        %1649 = vmatpush1.msra.mxu0 0.0
        %1650 = vmatprep.subr.mxu0 0.0
        %1651 = vmatpush1.msra.mxu0 0.0
        %1652 = vmatprep.subr.mxu0 0.0
        %1653 = vmatpush1.msra.mxu0 0.0
        %1654 = vmatprep.subr.mxu0 0.0
        %1655 = vmatpush1.msra.mxu0 0.0
        %1656 = vmatprep.subr.mxu0 0.0
        %1657 = vmatpush1.msra.mxu0 0.0
        %1658 = vmatprep.subr.mxu0 0.0
        %1659 = vmatpush1.msra.mxu0 0.0
        %1660 = vmatprep.subr.mxu0 0.0
        %1661 = vmatpush1.msra.mxu0 0.0
        %1662 = vmatprep.subr.mxu0 0.0
        %1663 = vmatpush1.msra.mxu0 0.0
        %1664 = vmatprep.subr.mxu0 0.0
        %1665 = vmatpush1.msra.mxu0 0.0
        %1666 = vmatprep.subr.mxu0 0.0
        %1667 = vmatpush1.msra.mxu0 0.0
        %1668 = vmatprep.subr.mxu0 0.0
        %1669 = vmatpush1.msra.mxu0 0.0
        %1670 = vmatprep.subr.mxu0 0.0
        %1671 = vmatpush1.msra.mxu0 0.0
        %1672 = vmatprep.subr.mxu0 0.0
        %1673 = vmatpush1.msra.mxu0 0.0
        %1674 = vmatprep.subr.mxu0 0.0
        %1675 = vmatpush1.msra.mxu0 %v1235
        %1676 = vmatprep.subr.mxu0 0.0
        %1677 = vmatpush2.msra.mxu0 0.0
        %1678 = vmatprep.subr.mxu0 0.0
        %1679 = vmatpush2.msra.mxu0 0.0
        %1680 = vmatprep.subr.mxu0 0.0
        %1681 = vmatpush2.msra.mxu0 0.0
        %1682 = vmatprep.subr.mxu0 0.0
        %1683 = vmatpush2.msra.mxu0 0.0
        %1684 = vmatprep.subr.mxu0 0.0
        %1685 = vmatpush2.msra.mxu0 0.0
        %1686 = vmatprep.subr.mxu0 0.0
        %1687 = vmatpush2.msra.mxu0 0.0
        %1688 = vmatprep.subr.mxu0 0.0
        %1689 = vmatpush2.msra.mxu0 0.0
        %1690 = vmatprep.subr.mxu0 0.0
        %1691 = vmatpush2.msra.mxu0 0.0
        %1692 = vmatprep.subr.mxu0 0.0
        %1693 = vmatpush2.msra.mxu0 0.0
        %1694 = vmatprep.subr.mxu0 0.0
        %1695 = vmatpush2.msra.mxu0 0.0
        %1696 = vmatprep.subr.mxu0 0.0
        %1697 = vmatpush2.msra.mxu0 0.0
        %1698 = vmatprep.subr.mxu0 0.0
        %1699 = vmatpush2.msra.mxu0 0.0
        %1700 = vmatprep.subr.mxu0 0.0
        %1701 = vmatpush2.msra.mxu0 0.0
        %1702 = vmatprep.subr.mxu0 0.0
        %1703 = vmatpush2.msra.mxu0 0.0
        %1704 = vmatprep.subr.mxu0 0.0
        %1705 = vmatpush2.msra.mxu0 0.0
        %1706 = vmatprep.subr.mxu0 0.0
        %1707 = vmatpush2.msra.mxu0 0.0
        %1708 = vmatprep.mubr.f32.mxu0 0.0
        %1709 = vmatmul.mubr.f32.gmra.mxu0 %v734
        %v1710 = vpop.f32.mrf.mxu0
        %v1711 = vadd.f32 0.0, %v1710
        %v1712 = vpop.f32.mrf.mxu0
        %1713 = vdwg.mxu0
        %1714 = vmatprep.subr.mxu0 0.0
        %1715 = vmatpush1.msra.mxu0 0.0
        %1716 = vmatprep.subr.mxu0 0.0
        %1717 = vmatpush1.msra.mxu0 0.0
        %1718 = vmatprep.subr.mxu0 0.0
        %1719 = vmatpush1.msra.mxu0 0.0
        %1720 = vmatprep.subr.mxu0 0.0
        %1721 = vmatpush1.msra.mxu0 0.0
        %1722 = vmatprep.subr.mxu0 0.0
        %1723 = vmatpush1.msra.mxu0 0.0
        %1724 = vmatprep.subr.mxu0 0.0
        %1725 = vmatpush1.msra.mxu0 0.0
        %1726 = vmatprep.subr.mxu0 0.0
        %1727 = vmatpush1.msra.mxu0 0.0
        %1728 = vmatprep.subr.mxu0 0.0
        %1729 = vmatpush1.msra.mxu0 0.0
        %1730 = vmatprep.subr.mxu0 0.0
        %1731 = vmatpush1.msra.mxu0 0.0
        %1732 = vmatprep.subr.mxu0 0.0
        %1733 = vmatpush1.msra.mxu0 0.0
        %1734 = vmatprep.subr.mxu0 0.0
        %1735 = vmatpush1.msra.mxu0 0.0
        %1736 = vmatprep.subr.mxu0 0.0
        %1737 = vmatpush1.msra.mxu0 0.0
        %1738 = vmatprep.subr.mxu0 0.0
        %1739 = vmatpush1.msra.mxu0 0.0
        %1740 = vmatprep.subr.mxu0 0.0
        %1741 = vmatpush1.msra.mxu0 0.0
        %1742 = vmatprep.subr.mxu0 0.0
        %1743 = vmatpush1.msra.mxu0 0.0
        %1744 = vmatprep.subr.mxu0 0.0
        %1745 = vmatpush1.msra.mxu0 %v1236
        %1746 = vmatprep.subr.mxu0 0.0
        %1747 = vmatpush2.msra.mxu0 0.0
        %1748 = vmatprep.subr.mxu0 0.0
        %1749 = vmatpush2.msra.mxu0 0.0
        %1750 = vmatprep.subr.mxu0 0.0
        %1751 = vmatpush2.msra.mxu0 0.0
        %1752 = vmatprep.subr.mxu0 0.0
        %1753 = vmatpush2.msra.mxu0 0.0
        %1754 = vmatprep.subr.mxu0 0.0
        %1755 = vmatpush2.msra.mxu0 0.0
        %1756 = vmatprep.subr.mxu0 0.0
        %1757 = vmatpush2.msra.mxu0 0.0
        %1758 = vmatprep.subr.mxu0 0.0
        %1759 = vmatpush2.msra.mxu0 0.0
        %1760 = vmatprep.subr.mxu0 0.0
        %1761 = vmatpush2.msra.mxu0 0.0
        %1762 = vmatprep.subr.mxu0 0.0
        %1763 = vmatpush2.msra.mxu0 0.0
        %1764 = vmatprep.subr.mxu0 0.0
        %1765 = vmatpush2.msra.mxu0 0.0
        %1766 = vmatprep.subr.mxu0 0.0
        %1767 = vmatpush2.msra.mxu0 0.0
        %1768 = vmatprep.subr.mxu0 0.0
        %1769 = vmatpush2.msra.mxu0 0.0
        %1770 = vmatprep.subr.mxu0 0.0
        %1771 = vmatpush2.msra.mxu0 0.0
        %1772 = vmatprep.subr.mxu0 0.0
        %1773 = vmatpush2.msra.mxu0 0.0
        %1774 = vmatprep.subr.mxu0 0.0
        %1775 = vmatpush2.msra.mxu0 0.0
        %1776 = vmatprep.subr.mxu0 0.0
        %1777 = vmatpush2.msra.mxu0 0.0
        %1778 = vmatprep.mubr.f32.mxu0 0.0
        %1779 = vmatmul.mubr.f32.gmra.mxu0 %v807
        %v1780 = vpop.f32.mrf.mxu0
        %v1781 = vadd.f32 0.0, %v1780
        %v1782 = vpop.f32.mrf.mxu0
        %1783 = vdwg.mxu0
        %1784 = vmatprep.subr.mxu0 0.0
        %1785 = vmatpush1.msra.mxu0 0.0
        %1786 = vmatprep.subr.mxu0 0.0
        %1787 = vmatpush1.msra.mxu0 0.0
        %1788 = vmatprep.subr.mxu0 0.0
        %1789 = vmatpush1.msra.mxu0 0.0
        %1790 = vmatprep.subr.mxu0 0.0
        %1791 = vmatpush1.msra.mxu0 0.0
        %1792 = vmatprep.subr.mxu0 0.0
        %1793 = vmatpush1.msra.mxu0 0.0
        %1794 = vmatprep.subr.mxu0 0.0
        %1795 = vmatpush1.msra.mxu0 0.0
        %1796 = vmatprep.subr.mxu0 0.0
        %1797 = vmatpush1.msra.mxu0 0.0
        %1798 = vmatprep.subr.mxu0 0.0
        %1799 = vmatpush1.msra.mxu0 0.0
        %1800 = vmatprep.subr.mxu0 0.0
        %1801 = vmatpush1.msra.mxu0 0.0
        %1802 = vmatprep.subr.mxu0 0.0
        %1803 = vmatpush1.msra.mxu0 0.0
        %1804 = vmatprep.subr.mxu0 0.0
        %1805 = vmatpush1.msra.mxu0 0.0
        %1806 = vmatprep.subr.mxu0 0.0
        %1807 = vmatpush1.msra.mxu0 0.0
        %1808 = vmatprep.subr.mxu0 0.0
        %1809 = vmatpush1.msra.mxu0 0.0
        %1810 = vmatprep.subr.mxu0 0.0
        %1811 = vmatpush1.msra.mxu0 0.0
        %1812 = vmatprep.subr.mxu0 0.0
        %1813 = vmatpush1.msra.mxu0 0.0
        %1814 = vmatprep.subr.mxu0 0.0
        %1815 = vmatpush1.msra.mxu0 %v1237
        %1816 = vmatprep.subr.mxu0 0.0
        %1817 = vmatpush2.msra.mxu0 0.0
        %1818 = vmatprep.subr.mxu0 0.0
        %1819 = vmatpush2.msra.mxu0 0.0
        %1820 = vmatprep.subr.mxu0 0.0
        %1821 = vmatpush2.msra.mxu0 0.0
        %1822 = vmatprep.subr.mxu0 0.0
        %1823 = vmatpush2.msra.mxu0 0.0
        %1824 = vmatprep.subr.mxu0 0.0
        %1825 = vmatpush2.msra.mxu0 0.0
        %1826 = vmatprep.subr.mxu0 0.0
        %1827 = vmatpush2.msra.mxu0 0.0
        %1828 = vmatprep.subr.mxu0 0.0
        %1829 = vmatpush2.msra.mxu0 0.0
        %1830 = vmatprep.subr.mxu0 0.0
        %1831 = vmatpush2.msra.mxu0 0.0
        %1832 = vmatprep.subr.mxu0 0.0
        %1833 = vmatpush2.msra.mxu0 0.0
        %1834 = vmatprep.subr.mxu0 0.0
        %1835 = vmatpush2.msra.mxu0 0.0
        %1836 = vmatprep.subr.mxu0 0.0
        %1837 = vmatpush2.msra.mxu0 0.0
        %1838 = vmatprep.subr.mxu0 0.0
        %1839 = vmatpush2.msra.mxu0 0.0
        %1840 = vmatprep.subr.mxu0 0.0
        %1841 = vmatpush2.msra.mxu0 0.0
        %1842 = vmatprep.subr.mxu0 0.0
        %1843 = vmatpush2.msra.mxu0 0.0
        %1844 = vmatprep.subr.mxu0 0.0
        %1845 = vmatpush2.msra.mxu0 0.0
        %1846 = vmatprep.subr.mxu0 0.0
        %1847 = vmatpush2.msra.mxu0 0.0
        %1848 = vmatprep.mubr.f32.mxu0 0.0
        %1849 = vmatmul.mubr.f32.gmra.mxu0 %v880
        %v1850 = vpop.f32.mrf.mxu0
        %v1851 = vadd.f32 0.0, %v1850
        %v1852 = vpop.f32.mrf.mxu0
        %1853 = vdwg.mxu0
        %v1854 = vlaneseq
        %v1855 = vshrl.u32 %v1854, 7
        %v1856 = vsub.s32 0, %v1855
        %v1857 = vrot.slane %v357, %v1856
        %v1859 = vsel %vm1100, %v1361, 0
        %v1862 = vsel %vm1100, %v1431, 0
        %v1865 = vsel %vm1100, %v1501, 0
        %v1868 = vsel %vm1100, %v1571, 0
        %v1871 = vsel %vm1100, %v1641, 0
        %v1874 = vsel %vm1100, %v1711, 0
        %v1877 = vsel %vm1100, %v1781, 0
        %v1880 = vsel %vm1100, %v1851, 0
        %1882 = vmatprep.subr.mxu0 0.0
        %1883 = vmatpush1.msra.mxu0 0.0
        %1884 = vmatprep.subr.mxu0 0.0
        %1885 = vmatpush1.msra.mxu0 0.0
        %1886 = vmatprep.subr.mxu0 0.0
        %1887 = vmatpush1.msra.mxu0 0.0
        %1888 = vmatprep.subr.mxu0 0.0
        %1889 = vmatpush1.msra.mxu0 0.0
        %1890 = vmatprep.subr.mxu0 0.0
        %1891 = vmatpush1.msra.mxu0 0.0
        %1892 = vmatprep.subr.mxu0 0.0
        %1893 = vmatpush1.msra.mxu0 0.0
        %1894 = vmatprep.subr.mxu0 0.0
        %1895 = vmatpush1.msra.mxu0 0.0
        %1896 = vmatprep.subr.mxu0 0.0
        %1897 = vmatpush1.msra.mxu0 0.0
        %1898 = vmatprep.subr.mxu0 0.0
        %1899 = vmatpush1.msra.mxu0 0.0
        %1900 = vmatprep.subr.mxu0 0.0
        %1901 = vmatpush1.msra.mxu0 0.0
        %1902 = vmatprep.subr.mxu0 0.0
        %1903 = vmatpush1.msra.mxu0 0.0
        %1904 = vmatprep.subr.mxu0 0.0
        %1905 = vmatpush1.msra.mxu0 0.0
        %1906 = vmatprep.subr.mxu0 0.0
        %1907 = vmatpush1.msra.mxu0 %v351
        %1908 = vmatprep.subr.mxu0 0.0
        %1909 = vmatpush1.msra.mxu0 %v350
        %1910 = vmatprep.subr.mxu0 0.0
        %1911 = vmatpush1.msra.mxu0 %v349
        %1912 = vmatprep.subr.mxu0 0.0
        %1913 = vmatpush1.msra.mxu0 %v348
        %1914 = vmatprep.subr.mxu0 0.0
        %1915 = vmatpush2.msra.mxu0 0.0
        %1916 = vmatprep.subr.mxu0 0.0
        %1917 = vmatpush2.msra.mxu0 0.0
        %1918 = vmatprep.subr.mxu0 0.0
        %1919 = vmatpush2.msra.mxu0 0.0
        %1920 = vmatprep.subr.mxu0 0.0
        %1921 = vmatpush2.msra.mxu0 0.0
        %1922 = vmatprep.subr.mxu0 0.0
        %1923 = vmatpush2.msra.mxu0 0.0
        %1924 = vmatprep.subr.mxu0 0.0
        %1925 = vmatpush2.msra.mxu0 0.0
        %1926 = vmatprep.subr.mxu0 0.0
        %1927 = vmatpush2.msra.mxu0 0.0
        %1928 = vmatprep.subr.mxu0 0.0
        %1929 = vmatpush2.msra.mxu0 0.0
        %1930 = vmatprep.subr.mxu0 0.0
        %1931 = vmatpush2.msra.mxu0 0.0
        %1932 = vmatprep.subr.mxu0 0.0
        %1933 = vmatpush2.msra.mxu0 0.0
        %1934 = vmatprep.subr.mxu0 0.0
        %1935 = vmatpush2.msra.mxu0 0.0
        %1936 = vmatprep.subr.mxu0 0.0
        %1937 = vmatpush2.msra.mxu0 0.0
        %1938 = vmatprep.subr.mxu0 0.0
        %1939 = vmatpush2.msra.mxu0 0.0
        %1940 = vmatprep.subr.mxu0 0.0
        %1941 = vmatpush2.msra.mxu0 0.0
        %1942 = vmatprep.subr.mxu0 0.0
        %1943 = vmatpush2.msra.mxu0 0.0
        %1944 = vmatprep.subr.mxu0 0.0
        %1945 = vmatpush2.msra.mxu0 0.0
        %1946 = vmatprep.mubr.f32.mxu0 0.0
        %1947 = vmatmul.mubr.f32.gmra.mxu0 %v1859
        %v1948 = vpop.f32.mrf.mxu0
        %v1949 = vadd.f32 %v1857, %v1948
        %v1950 = vpop.f32.mrf.mxu0
        %1951 = vmatprep.mubr.f32.mxu0 0.0
        %1952 = vmatmul.mubr.f32.gmra.mxu0 %v1862
        %v1953 = vpop.f32.mrf.mxu0
        %v1954 = vadd.f32 %v1857, %v1953
        %v1955 = vpop.f32.mrf.mxu0
        %1956 = vmatprep.mubr.f32.mxu0 0.0
        %1957 = vmatmul.mubr.f32.gmra.mxu0 %v1865
        %v1958 = vpop.f32.mrf.mxu0
        %v1959 = vadd.f32 %v1857, %v1958
        %v1960 = vpop.f32.mrf.mxu0
        %1961 = vmatprep.mubr.f32.mxu0 0.0
        %1962 = vmatmul.mubr.f32.gmra.mxu0 %v1868
        %v1963 = vpop.f32.mrf.mxu0
        %v1964 = vadd.f32 %v1857, %v1963
        %v1965 = vpop.f32.mrf.mxu0
        %1966 = vmatprep.mubr.f32.mxu0 0.0
        %1967 = vmatmul.mubr.f32.gmra.mxu0 %v1871
        %v1968 = vpop.f32.mrf.mxu0
        %v1969 = vadd.f32 %v1857, %v1968
        %v1970 = vpop.f32.mrf.mxu0
        %1971 = vmatprep.mubr.f32.mxu0 0.0
        %1972 = vmatmul.mubr.f32.gmra.mxu0 %v1874
        %v1973 = vpop.f32.mrf.mxu0
        %v1974 = vadd.f32 %v1857, %v1973
        %v1975 = vpop.f32.mrf.mxu0
        %1976 = vmatprep.mubr.f32.mxu0 0.0
        %1977 = vmatmul.mubr.f32.gmra.mxu0 %v1877
        %v1978 = vpop.f32.mrf.mxu0
        %v1979 = vadd.f32 %v1857, %v1978
        %v1980 = vpop.f32.mrf.mxu0
        %1981 = vmatprep.mubr.f32.mxu0 0.0
        %1982 = vmatmul.mubr.f32.gmra.mxu0 %v1880
        %v1983 = vpop.f32.mrf.mxu0
        %v1984 = vadd.f32 %v1857, %v1983
        %v1985 = vpop.f32.mrf.mxu0
        %1986 = vdwg.mxu0
        %v1987 = vmax.f32 %v1949, 0.0
        %v1988 = vmax.f32 %v1954, 0.0
        %v1989 = vmax.f32 %v1959, 0.0
        %v1990 = vmax.f32 %v1964, 0.0
        %v1991 = vmax.f32 %v1969, 0.0
        %v1992 = vmax.f32 %v1974, 0.0
        %v1993 = vmax.f32 %v1979, 0.0
        %v1994 = vmax.f32 %v1984, 0.0
        %v1995 = vlaneseq
        %v1996 = vshrl.u32 %v1995, 7
        %v1997 = vsub.s32 1, %v1996
        %v1998 = vrot.slane %v357, %v1997
        %v2000 = vsel %vm1100, %v1987, 0
        %v2003 = vsel %vm1100, %v1988, 0
        %v2006 = vsel %vm1100, %v1989, 0
        %v2009 = vsel %vm1100, %v1990, 0
        %v2012 = vsel %vm1100, %v1991, 0
        %v2015 = vsel %vm1100, %v1992, 0
        %v2018 = vsel %vm1100, %v1993, 0
        %v2021 = vsel %vm1100, %v1994, 0
        %2023 = vmatprep.subr.mxu0 0.0
        %2024 = vmatpush1.msra.mxu0 0.0
        %2025 = vmatprep.subr.mxu0 0.0
        %2026 = vmatpush1.msra.mxu0 0.0
        %2027 = vmatprep.subr.mxu0 0.0
        %2028 = vmatpush1.msra.mxu0 0.0
        %2029 = vmatprep.subr.mxu0 0.0
        %2030 = vmatpush1.msra.mxu0 0.0
        %2031 = vmatprep.subr.mxu0 0.0
        %2032 = vmatpush1.msra.mxu0 0.0
        %2033 = vmatprep.subr.mxu0 0.0
        %2034 = vmatpush1.msra.mxu0 0.0
        %2035 = vmatprep.subr.mxu0 0.0
        %2036 = vmatpush1.msra.mxu0 0.0
        %2037 = vmatprep.subr.mxu0 0.0
        %2038 = vmatpush1.msra.mxu0 0.0
        %2039 = vmatprep.subr.mxu0 0.0
        %2040 = vmatpush1.msra.mxu0 0.0
        %2041 = vmatprep.subr.mxu0 0.0
        %2042 = vmatpush1.msra.mxu0 0.0
        %2043 = vmatprep.subr.mxu0 0.0
        %2044 = vmatpush1.msra.mxu0 0.0
        %2045 = vmatprep.subr.mxu0 0.0
        %2046 = vmatpush1.msra.mxu0 0.0
        %2047 = vmatprep.subr.mxu0 0.0
        %2048 = vmatpush1.msra.mxu0 %v355
        %2049 = vmatprep.subr.mxu0 0.0
        %2050 = vmatpush1.msra.mxu0 %v354
        %2051 = vmatprep.subr.mxu0 0.0
        %2052 = vmatpush1.msra.mxu0 %v353
        %2053 = vmatprep.subr.mxu0 0.0
        %2054 = vmatpush1.msra.mxu0 %v352
        %2055 = vmatprep.subr.mxu0 0.0
        %2056 = vmatpush2.msra.mxu0 0.0
        %2057 = vmatprep.subr.mxu0 0.0
        %2058 = vmatpush2.msra.mxu0 0.0
        %2059 = vmatprep.subr.mxu0 0.0
        %2060 = vmatpush2.msra.mxu0 0.0
        %2061 = vmatprep.subr.mxu0 0.0
        %2062 = vmatpush2.msra.mxu0 0.0
        %2063 = vmatprep.subr.mxu0 0.0
        %2064 = vmatpush2.msra.mxu0 0.0
        %2065 = vmatprep.subr.mxu0 0.0
        %2066 = vmatpush2.msra.mxu0 0.0
        %2067 = vmatprep.subr.mxu0 0.0
        %2068 = vmatpush2.msra.mxu0 0.0
        %2069 = vmatprep.subr.mxu0 0.0
        %2070 = vmatpush2.msra.mxu0 0.0
        %2071 = vmatprep.subr.mxu0 0.0
        %2072 = vmatpush2.msra.mxu0 0.0
        %2073 = vmatprep.subr.mxu0 0.0
        %2074 = vmatpush2.msra.mxu0 0.0
        %2075 = vmatprep.subr.mxu0 0.0
        %2076 = vmatpush2.msra.mxu0 0.0
        %2077 = vmatprep.subr.mxu0 0.0
        %2078 = vmatpush2.msra.mxu0 0.0
        %2079 = vmatprep.subr.mxu0 0.0
        %2080 = vmatpush2.msra.mxu0 0.0
        %2081 = vmatprep.subr.mxu0 0.0
        %2082 = vmatpush2.msra.mxu0 0.0
        %2083 = vmatprep.subr.mxu0 0.0
        %2084 = vmatpush2.msra.mxu0 0.0
        %2085 = vmatprep.subr.mxu0 0.0
        %2086 = vmatpush2.msra.mxu0 0.0
        %2087 = vmatprep.mubr.f32.mxu0 0.0
        %2088 = vmatmul.mubr.f32.gmra.mxu0 %v2000
        %v2089 = vpop.f32.mrf.mxu0
        %v2090 = vadd.f32 %v1998, %v2089
        %v2091 = vpop.f32.mrf.mxu0
        %2092 = vmatprep.mubr.f32.mxu0 0.0
        %2093 = vmatmul.mubr.f32.gmra.mxu0 %v2003
        %v2094 = vpop.f32.mrf.mxu0
        %v2095 = vadd.f32 %v1998, %v2094
        %v2096 = vpop.f32.mrf.mxu0
        %2097 = vmatprep.mubr.f32.mxu0 0.0
        %2098 = vmatmul.mubr.f32.gmra.mxu0 %v2006
        %v2099 = vpop.f32.mrf.mxu0
        %v2100 = vadd.f32 %v1998, %v2099
        %v2101 = vpop.f32.mrf.mxu0
        %2102 = vmatprep.mubr.f32.mxu0 0.0
        %2103 = vmatmul.mubr.f32.gmra.mxu0 %v2009
        %v2104 = vpop.f32.mrf.mxu0
        %v2105 = vadd.f32 %v1998, %v2104
        %v2106 = vpop.f32.mrf.mxu0
        %2107 = vmatprep.mubr.f32.mxu0 0.0
        %2108 = vmatmul.mubr.f32.gmra.mxu0 %v2012
        %v2109 = vpop.f32.mrf.mxu0
        %v2110 = vadd.f32 %v1998, %v2109
        %v2111 = vpop.f32.mrf.mxu0
        %2112 = vmatprep.mubr.f32.mxu0 0.0
        %2113 = vmatmul.mubr.f32.gmra.mxu0 %v2015
        %v2114 = vpop.f32.mrf.mxu0
        %v2115 = vadd.f32 %v1998, %v2114
        %v2116 = vpop.f32.mrf.mxu0
        %2117 = vmatprep.mubr.f32.mxu0 0.0
        %2118 = vmatmul.mubr.f32.gmra.mxu0 %v2018
        %v2119 = vpop.f32.mrf.mxu0
        %v2120 = vadd.f32 %v1998, %v2119
        %v2121 = vpop.f32.mrf.mxu0
        %2122 = vmatprep.mubr.f32.mxu0 0.0
        %2123 = vmatmul.mubr.f32.gmra.mxu0 %v2021
        %v2124 = vpop.f32.mrf.mxu0
        %v2125 = vadd.f32 %v1998, %v2124
        %v2126 = vpop.f32.mrf.mxu0
        %2127 = vdwg.mxu0
        %v2128 = vmax.f32 %v2090, 0.0
        %v2129 = vmax.f32 %v2095, 0.0
        %v2130 = vmax.f32 %v2100, 0.0
        %v2131 = vmax.f32 %v2105, 0.0
        %v2132 = vmax.f32 %v2110, 0.0
        %v2133 = vmax.f32 %v2115, 0.0
        %v2134 = vmax.f32 %v2120, 0.0
        %v2135 = vmax.f32 %v2125, 0.0
        %v2136 = vsel %vm1100, %v2128, 0.0
        %v2137 = vrot.slane %v2136, 4
        %v2138 = vadd.f32 %v2136, %v2137
        %v2139 = vrot.slane %v2138, 2
        %v2140 = vadd.f32 %v2138, %v2139
        %v2141 = vrot.slane %v2140, 1
        %v2142 = vadd.f32 %v2140, %v2141
        %v2143 = vsel %vm1100, %v2129, 0.0
        %v2144 = vrot.slane %v2143, 4
        %v2145 = vadd.f32 %v2143, %v2144
        %v2146 = vrot.slane %v2145, 2
        %v2147 = vadd.f32 %v2145, %v2146
        %v2148 = vrot.slane %v2147, 1
        %v2149 = vadd.f32 %v2147, %v2148
        %v2150 = vsel %vm1100, %v2130, 0.0
        %v2151 = vrot.slane %v2150, 4
        %v2152 = vadd.f32 %v2150, %v2151
        %v2153 = vrot.slane %v2152, 2
        %v2154 = vadd.f32 %v2152, %v2153
        %v2155 = vrot.slane %v2154, 1
        %v2156 = vadd.f32 %v2154, %v2155
        %v2157 = vsel %vm1100, %v2131, 0.0
        %v2158 = vrot.slane %v2157, 4
        %v2159 = vadd.f32 %v2157, %v2158
        %v2160 = vrot.slane %v2159, 2
        %v2161 = vadd.f32 %v2159, %v2160
        %v2162 = vrot.slane %v2161, 1
        %v2163 = vadd.f32 %v2161, %v2162
        %v2164 = vsel %vm1100, %v2132, 0.0
        %v2165 = vrot.slane %v2164, 4
        %v2166 = vadd.f32 %v2164, %v2165
        %v2167 = vrot.slane %v2166, 2
        %v2168 = vadd.f32 %v2166, %v2167
        %v2169 = vrot.slane %v2168, 1
        %v2170 = vadd.f32 %v2168, %v2169
        %v2171 = vsel %vm1100, %v2133, 0.0
        %v2172 = vrot.slane %v2171, 4
        %v2173 = vadd.f32 %v2171, %v2172
        %v2174 = vrot.slane %v2173, 2
        %v2175 = vadd.f32 %v2173, %v2174
        %v2176 = vrot.slane %v2175, 1
        %v2177 = vadd.f32 %v2175, %v2176
        %v2178 = vsel %vm1100, %v2134, 0.0
        %v2179 = vrot.slane %v2178, 4
        %v2180 = vadd.f32 %v2178, %v2179
        %v2181 = vrot.slane %v2180, 2
        %v2182 = vadd.f32 %v2180, %v2181
        %v2183 = vrot.slane %v2182, 1
        %v2184 = vadd.f32 %v2182, %v2183
        %v2185 = vsel %vm1100, %v2135, 0.0
        %v2186 = vrot.slane %v2185, 4
        %v2187 = vadd.f32 %v2185, %v2186
        %v2188 = vrot.slane %v2187, 2
        %v2189 = vadd.f32 %v2187, %v2188
        %v2190 = vrot.slane %v2189, 1
        %v2191 = vadd.f32 %v2189, %v2190
        %vm2200 = vcmask 1041409
        %v2201 = vsel %vm2200, %v2149, %v2142
        %vm2202 = vcmask 1042434
        %v2203 = vsel %vm2202, %v2156, %v2201
        %vm2204 = vcmask 1043459
        %v2205 = vsel %vm2204, %v2163, %v2203
        %vm2206 = vcmask 1044484
        %v2207 = vsel %vm2206, %v2170, %v2205
        %vm2208 = vcmask 1045509
        %v2209 = vsel %vm2208, %v2177, %v2207
        %vm2210 = vcmask 1046534
        %v2211 = vsel %vm2210, %v2184, %v2209
        %vm2212 = vcmask 1047559
        %v2213 = vsel %vm2212, %v2191, %v2211
        %v2214 = vsel %vm1100, %v2213, 0
        %2216 = vmatprep.subr.mxu0 0.0
        %2217 = vmatpush1.msra.mxu0 0.0
        %2218 = vmatprep.subr.mxu0 0.0
        %2219 = vmatpush1.msra.mxu0 0.0
        %2220 = vmatprep.subr.mxu0 0.0
        %2221 = vmatpush1.msra.mxu0 0.0
        %2222 = vmatprep.subr.mxu0 0.0
        %2223 = vmatpush1.msra.mxu0 0.0
        %2224 = vmatprep.subr.mxu0 0.0
        %2225 = vmatpush1.msra.mxu0 0.0
        %2226 = vmatprep.subr.mxu0 0.0
        %2227 = vmatpush1.msra.mxu0 0.0
        %2228 = vmatprep.subr.mxu0 0.0
        %2229 = vmatpush1.msra.mxu0 0.0
        %2230 = vmatprep.subr.mxu0 0.0
        %2231 = vmatpush1.msra.mxu0 0.0
        %2232 = vmatprep.subr.mxu0 0.0
        %2233 = vmatpush1.msra.mxu0 0.0
        %2234 = vmatprep.subr.mxu0 0.0
        %2235 = vmatpush1.msra.mxu0 0.0
        %2236 = vmatprep.subr.mxu0 0.0
        %2237 = vmatpush1.msra.mxu0 0.0
        %2238 = vmatprep.subr.mxu0 0.0
        %2239 = vmatpush1.msra.mxu0 0.0
        %2240 = vmatprep.subr.mxu0 0.0
        %2241 = vmatpush1.msra.mxu0 %v365
        %2242 = vmatprep.subr.mxu0 0.0
        %2243 = vmatpush1.msra.mxu0 %v364
        %2244 = vmatprep.subr.mxu0 0.0
        %2245 = vmatpush1.msra.mxu0 %v363
        %2246 = vmatprep.subr.mxu0 0.0
        %2247 = vmatpush1.msra.mxu0 %v362
        %2248 = vmatprep.subr.mxu0 0.0
        %2249 = vmatpush2.msra.mxu0 0.0
        %2250 = vmatprep.subr.mxu0 0.0
        %2251 = vmatpush2.msra.mxu0 0.0
        %2252 = vmatprep.subr.mxu0 0.0
        %2253 = vmatpush2.msra.mxu0 0.0
        %2254 = vmatprep.subr.mxu0 0.0
        %2255 = vmatpush2.msra.mxu0 0.0
        %2256 = vmatprep.subr.mxu0 0.0
        %2257 = vmatpush2.msra.mxu0 0.0
        %2258 = vmatprep.subr.mxu0 0.0
        %2259 = vmatpush2.msra.mxu0 0.0
        %2260 = vmatprep.subr.mxu0 0.0
        %2261 = vmatpush2.msra.mxu0 0.0
        %2262 = vmatprep.subr.mxu0 0.0
        %2263 = vmatpush2.msra.mxu0 0.0
        %2264 = vmatprep.subr.mxu0 0.0
        %2265 = vmatpush2.msra.mxu0 0.0
        %2266 = vmatprep.subr.mxu0 0.0
        %2267 = vmatpush2.msra.mxu0 0.0
        %2268 = vmatprep.subr.mxu0 0.0
        %2269 = vmatpush2.msra.mxu0 0.0
        %2270 = vmatprep.subr.mxu0 0.0
        %2271 = vmatpush2.msra.mxu0 0.0
        %2272 = vmatprep.subr.mxu0 0.0
        %2273 = vmatpush2.msra.mxu0 0.0
        %2274 = vmatprep.subr.mxu0 0.0
        %2275 = vmatpush2.msra.mxu0 0.0
        %2276 = vmatprep.subr.mxu0 0.0
        %2277 = vmatpush2.msra.mxu0 0.0
        %2278 = vmatprep.subr.mxu0 0.0
        %2279 = vmatpush2.msra.mxu0 0.0
        %2280 = vmatprep.mubr.f32.mxu0 0.0
        %2281 = vmatmul.mubr.f32.gmra.mxu0 %v2214
        %v2282 = vpop.f32.mrf.mxu0
        %v2283 = vadd.f32 0.0, %v2282
        %v2284 = vpop.f32.mrf.mxu0
        %2285 = vdwg.mxu0
        %v2294 = vsel %vm2200, %v1251, %v1244
        %v2295 = vsel %vm2202, %v1258, %v2294
        %v2296 = vsel %vm2204, %v1265, %v2295
        %v2297 = vsel %vm2206, %v1272, %v2296
        %v2298 = vsel %vm2208, %v1279, %v2297
        %v2299 = vsel %vm2210, %v1286, %v2298
        %v2300 = vsel %vm2212, %v1293, %v2299
        %v2301 = vsel %vm1100, %v2300, 0
        %2303 = vmatprep.subr.mxu0 0.0
        %2304 = vmatpush1.msra.mxu0 0.0
        %2305 = vmatprep.subr.mxu0 0.0
        %2306 = vmatpush1.msra.mxu0 0.0
        %2307 = vmatprep.subr.mxu0 0.0
        %2308 = vmatpush1.msra.mxu0 0.0
        %2309 = vmatprep.subr.mxu0 0.0
        %2310 = vmatpush1.msra.mxu0 0.0
        %2311 = vmatprep.subr.mxu0 0.0
        %2312 = vmatpush1.msra.mxu0 0.0
        %2313 = vmatprep.subr.mxu0 0.0
        %2314 = vmatpush1.msra.mxu0 0.0
        %2315 = vmatprep.subr.mxu0 0.0
        %2316 = vmatpush1.msra.mxu0 0.0
        %2317 = vmatprep.subr.mxu0 0.0
        %2318 = vmatpush1.msra.mxu0 0.0
        %2319 = vmatprep.subr.mxu0 0.0
        %2320 = vmatpush1.msra.mxu0 0.0
        %2321 = vmatprep.subr.mxu0 0.0
        %2322 = vmatpush1.msra.mxu0 0.0
        %2323 = vmatprep.subr.mxu0 0.0
        %2324 = vmatpush1.msra.mxu0 0.0
        %2325 = vmatprep.subr.mxu0 0.0
        %2326 = vmatpush1.msra.mxu0 0.0
        %2327 = vmatprep.subr.mxu0 0.0
        %2328 = vmatpush1.msra.mxu0 %v361
        %2329 = vmatprep.subr.mxu0 0.0
        %2330 = vmatpush1.msra.mxu0 %v360
        %2331 = vmatprep.subr.mxu0 0.0
        %2332 = vmatpush1.msra.mxu0 %v359
        %2333 = vmatprep.subr.mxu0 0.0
        %2334 = vmatpush1.msra.mxu0 %v358
        %2335 = vmatprep.subr.mxu0 0.0
        %2336 = vmatpush2.msra.mxu0 0.0
        %2337 = vmatprep.subr.mxu0 0.0
        %2338 = vmatpush2.msra.mxu0 0.0
        %2339 = vmatprep.subr.mxu0 0.0
        %2340 = vmatpush2.msra.mxu0 0.0
        %2341 = vmatprep.subr.mxu0 0.0
        %2342 = vmatpush2.msra.mxu0 0.0
        %2343 = vmatprep.subr.mxu0 0.0
        %2344 = vmatpush2.msra.mxu0 0.0
        %2345 = vmatprep.subr.mxu0 0.0
        %2346 = vmatpush2.msra.mxu0 0.0
        %2347 = vmatprep.subr.mxu0 0.0
        %2348 = vmatpush2.msra.mxu0 0.0
        %2349 = vmatprep.subr.mxu0 0.0
        %2350 = vmatpush2.msra.mxu0 0.0
        %2351 = vmatprep.subr.mxu0 0.0
        %2352 = vmatpush2.msra.mxu0 0.0
        %2353 = vmatprep.subr.mxu0 0.0
        %2354 = vmatpush2.msra.mxu0 0.0
        %2355 = vmatprep.subr.mxu0 0.0
        %2356 = vmatpush2.msra.mxu0 0.0
        %2357 = vmatprep.subr.mxu0 0.0
        %2358 = vmatpush2.msra.mxu0 0.0
        %2359 = vmatprep.subr.mxu0 0.0
        %2360 = vmatpush2.msra.mxu0 0.0
        %2361 = vmatprep.subr.mxu0 0.0
        %2362 = vmatpush2.msra.mxu0 0.0
        %2363 = vmatprep.subr.mxu0 0.0
        %2364 = vmatpush2.msra.mxu0 0.0
        %2365 = vmatprep.subr.mxu0 0.0
        %2366 = vmatpush2.msra.mxu0 0.0
        %2367 = vmatprep.mubr.f32.mxu0 0.0
        %2368 = vmatmul.mubr.f32.gmra.mxu0 %v2301
        %v2369 = vpop.f32.mrf.mxu0
        %v2370 = vadd.f32 %v2283, %v2369
        %v2371 = vpop.f32.mrf.mxu0
        %2372 = vdwg.mxu0
        %v2373 = vlaneseq
        %v2374 = vshrl.u32 %v2373, 7
        %v2375 = vsub.s32 0, %v2374
        %v2376 = vrot.slane %v366, %v2375
        %v2377 = vadd.f32 %v2370, %v2376
        %v2378 = vmax.f32 %v2377, 0.0
        %v2379 = vld [vmem:[%s6] sm:$0xff]
        %v2380 = vld [vmem:[%s6 + $0x8] sm:$0xff]
        %v2381 = vld [vmem:[%s6 + $0x10] sm:$0xff]
        %v2382 = vld [vmem:[%s6 + $0x18] sm:$0xff]
        %v2383 = vlaneseq
        %v2384 = vshrl.u32 %v2383, 7
        %v2385 = vsub.s32 1, %v2384
        %v2386 = vrot.slane %v366, %v2385
        %v2388 = vsel %vm1100, %v2378, 0
        %2390 = vmatprep.subr.mxu0 0.0
        %2391 = vmatpush1.msra.mxu0 0.0
        %2392 = vmatprep.subr.mxu0 0.0
        %2393 = vmatpush1.msra.mxu0 0.0
        %2394 = vmatprep.subr.mxu0 0.0
        %2395 = vmatpush1.msra.mxu0 0.0
        %2396 = vmatprep.subr.mxu0 0.0
        %2397 = vmatpush1.msra.mxu0 0.0
        %2398 = vmatprep.subr.mxu0 0.0
        %2399 = vmatpush1.msra.mxu0 0.0
        %2400 = vmatprep.subr.mxu0 0.0
        %2401 = vmatpush1.msra.mxu0 0.0
        %2402 = vmatprep.subr.mxu0 0.0
        %2403 = vmatpush1.msra.mxu0 0.0
        %2404 = vmatprep.subr.mxu0 0.0
        %2405 = vmatpush1.msra.mxu0 0.0
        %2406 = vmatprep.subr.mxu0 0.0
        %2407 = vmatpush1.msra.mxu0 0.0
        %2408 = vmatprep.subr.mxu0 0.0
        %2409 = vmatpush1.msra.mxu0 0.0
        %2410 = vmatprep.subr.mxu0 0.0
        %2411 = vmatpush1.msra.mxu0 0.0
        %2412 = vmatprep.subr.mxu0 0.0
        %2413 = vmatpush1.msra.mxu0 0.0
        %2414 = vmatprep.subr.mxu0 0.0
        %2415 = vmatpush1.msra.mxu0 %v2382
        %2416 = vmatprep.subr.mxu0 0.0
        %2417 = vmatpush1.msra.mxu0 %v2381
        %2418 = vmatprep.subr.mxu0 0.0
        %2419 = vmatpush1.msra.mxu0 %v2380
        %2420 = vmatprep.subr.mxu0 0.0
        %2421 = vmatpush1.msra.mxu0 %v2379
        %2422 = vmatprep.subr.mxu0 0.0
        %2423 = vmatpush2.msra.mxu0 0.0
        %2424 = vmatprep.subr.mxu0 0.0
        %2425 = vmatpush2.msra.mxu0 0.0
        %2426 = vmatprep.subr.mxu0 0.0
        %2427 = vmatpush2.msra.mxu0 0.0
        %2428 = vmatprep.subr.mxu0 0.0
        %2429 = vmatpush2.msra.mxu0 0.0
        %2430 = vmatprep.subr.mxu0 0.0
        %2431 = vmatpush2.msra.mxu0 0.0
        %2432 = vmatprep.subr.mxu0 0.0
        %2433 = vmatpush2.msra.mxu0 0.0
        %2434 = vmatprep.subr.mxu0 0.0
        %2435 = vmatpush2.msra.mxu0 0.0
        %2436 = vmatprep.subr.mxu0 0.0
        %2437 = vmatpush2.msra.mxu0 0.0
        %2438 = vmatprep.subr.mxu0 0.0
        %2439 = vmatpush2.msra.mxu0 0.0
        %2440 = vmatprep.subr.mxu0 0.0
        %2441 = vmatpush2.msra.mxu0 0.0
        %2442 = vmatprep.subr.mxu0 0.0
        %2443 = vmatpush2.msra.mxu0 0.0
        %2444 = vmatprep.subr.mxu0 0.0
        %2445 = vmatpush2.msra.mxu0 0.0
        %2446 = vmatprep.subr.mxu0 0.0
        %2447 = vmatpush2.msra.mxu0 0.0
        %2448 = vmatprep.subr.mxu0 0.0
        %2449 = vmatpush2.msra.mxu0 0.0
        %2450 = vmatprep.subr.mxu0 0.0
        %2451 = vmatpush2.msra.mxu0 0.0
        %2452 = vmatprep.subr.mxu0 0.0
        %2453 = vmatpush2.msra.mxu0 0.0
        %2454 = vmatprep.mubr.f32.mxu0 0.0
        %2455 = vmatmul.mubr.f32.gmra.mxu0 %v2388
        %v2456 = vpop.f32.mrf.mxu0
        %v2457 = vadd.f32 %v2386, %v2456
        %v2458 = vpop.f32.mrf.mxu0
        %2459 = vdwg.mxu0
        %2460 = vst.msk [vmem:[%s315] sm:$0xff] %vm1100, %v2457
        %s2461 = sand.u32 %s208, 1
        %s2462 = scalar_lea.sflag [#allocation3], %s2461
        %s2463 = sand.u32 %s208, 1
        %s2464 = smul.addr %s2463, 8
        %s2465 = scalar_lea.vmem [#allocation2], %s2464
        // Predicated region
        $region53: #{tpu_custom_call.1} parent=51 // pred_check
          %p2466 = pneg %p218
        $region54: #{tpu_custom_call.1} parent=51 // pred_check_branch
          %2468 = sbr.rel (%p2466) target = $region56
        $region55: #{tpu_custom_call.1} parent=51 // pred_region
          %s2470 = ssub.s32 128, 128
          %2471 = vsyncadd %s2462, %s2470
          %s2472 = smul.addr %s22, 128
          %s2473 = scalar_lea.hbm %s8, %s2472
          %s2475 = sshll.u32 %s2465, 4
          %s2476 = int_to_ptr.vmem [resolvable:$true] %s2475
          %2478 = dma.vmem_to_hbm [thread:$0]  %s2476, 128, %s2473, %s2462
        $region56: #{tpu_custom_call.1} parent=51 // pred_fallthru
          _
      $region52: #{tpu_custom_call.1} parent=5 // pred_fallthru
        _
      %p2479 = scmp.le.s32.totalorder 2, %s17
      // Predicated region
      $region57: #{tpu_custom_call.1} parent=5 // pred_check
        %p2480 = pneg %p2479
      $region58: #{tpu_custom_call.1} parent=5 // pred_check_branch
        %2482 = sbr.rel (%p2480) target = $region60
      $region59: #{tpu_custom_call.1} parent=5 // pred_region
        %s2483 = ssub.s32 %s17, 2
        // Predicated region
        $region61: #{tpu_custom_call.1} parent=59 // pred_check
          %p2484 = pneg %p224
        $region62: #{tpu_custom_call.1} parent=59 // pred_check_branch
          %2486 = sbr.rel (%p2484) target = $region64
        $region63: #{tpu_custom_call.1} parent=59 // pred_region
          %s2487 = sand.u32 %s209, 1
          %s2488 = scalar_lea.sflag [#allocation3], %s2487
          %s2489 = sand.u32 %s209, 1
          %s2490 = smul.addr %s2489, 8
          %s2491 = scalar_lea.vmem [#allocation2], %s2490
          %2492 = dma.done %s2488, 128
        $region64: #{tpu_custom_call.1} parent=59 // pred_fallthru
          _
      $region60: #{tpu_custom_call.1} parent=5 // pred_fallthru
        _
    $region6: #{tpu_custom_call.1} parent=1 // loop_footer
      %s21 = sadd.s32 1, %s17
    $region7: #{tpu_custom_call.1} parent=1 // loop_footer_branch
      %16 = sbr.rel target = $region3
    $region8: #{tpu_custom_call.1} parent=1 // loop_exit
      _
    %2493 = vsyncpa [#allocation3], 1
    %s2494 = scalar_lea.sflag [#allocation3], 1
    %2495 = vsyncpa %s2494, 1

</llo_original>
